<compile_context>
chip_gen: v6e
topology: v6e:2x2x1
jax: 0.10.0
libtpu: 0.0.40
codegen_flags: <defaults>
</compile_context>

<pallas_src>
import functools

import jax
import jax.numpy as jnp
from jax import lax
from jax.experimental import pallas as pl

D_MODEL = 32
N_HEAD = 4
HEAD_DIM = D_MODEL // N_HEAD
MLP_HIDDEN = int(D_MODEL * 4.0)
SEQ = 8
BATCH = 2
LN_EPS = 1e-5


def _layernorm(v, w, b):
    mu = jnp.mean(v, axis=-1, keepdims=True)
    var = jnp.mean((v - mu) ** 2, axis=-1, keepdims=True)
    return (v - mu) * lax.rsqrt(var + LN_EPS) * w + b


def _residual_block_kernel(x_ref, key_add_ref, wqkv_ref, wo_ref, w1_ref, w2_ref,
                           vec_ref, out_ref, *, n_batch):
    x = x_ref[...]                          # (NL, D) f32, token order t = l*N + n
    nl = x.shape[0]

    # Packed 1-row params: one (8, MLP_HIDDEN) tile instead of eight tiny padded DMAs.
    vec = vec_ref[...]
    ln1w, ln1b = vec[0:1, :D_MODEL], vec[1:2, :D_MODEL]
    bqkv = vec[2:3, :3 * D_MODEL]
    bo = vec[3:4, :D_MODEL]
    ln2w, ln2b = vec[4:5, :D_MODEL], vec[5:6, :D_MODEL]
    b1 = vec[6:7, :MLP_HIDDEN]
    b2 = vec[7:8, :D_MODEL]

    # Block-diagonal (per-batch) additive mask built in-kernel: no (NL,NL) HBM transfer.
    row_id = lax.broadcasted_iota(jnp.int32, (nl, nl), 0)
    col_id = lax.broadcasted_iota(jnp.int32, (nl, nl), 1)
    same_batch = (row_id % n_batch) == (col_id % n_batch)
    add_mask = jnp.where(same_batch, key_add_ref[...], -1e9)          # (NL, NL)

    # ---- attention branch: x + MHA(LN1(x)) ----
    xn = _layernorm(x, ln1w, ln1b)
    # fused QKV projection; 1/sqrt(head_dim) already folded into the Q columns/bias on host
    qkv = jnp.dot(xn.astype(jnp.bfloat16), wqkv_ref[...],
                  preferred_element_type=jnp.float32) + bqkv          # (NL, 3D) f32
    qkv_b = qkv.astype(jnp.bfloat16)
    wo = wo_ref[...]                                                  # (D, D) bf16 = W_o^T

    attn = None
    for h in range(N_HEAD):                                           # static unroll
        qh = qkv_b[:, h * HEAD_DIM:(h + 1) * HEAD_DIM]
        kh = qkv_b[:, D_MODEL + h * HEAD_DIM:D_MODEL + (h + 1) * HEAD_DIM]
        vh = qkv_b[:, 2 * D_MODEL + h * HEAD_DIM:2 * D_MODEL + (h + 1) * HEAD_DIM]
        # q @ k^T without materializing a transpose: contract last dims of both operands.
        s = lax.dot_general(qh, kh, (((1,), (1,)), ((), ())),
                            preferred_element_type=jnp.float32)       # (NL, NL)
        s = s + add_mask
        s = s - jnp.max(s, axis=-1, keepdims=True)
        p = jnp.exp(s)
        p = p * pl.reciprocal(jnp.sum(p, axis=-1, keepdims=True), approx=True)
        o_h = jnp.dot(p.astype(jnp.bfloat16), vh,
                      preferred_element_type=jnp.float32)             # (NL, hd)
        # per-head (hd, D) sublane slice of W_o^T -> accumulate (same math as concat + matmul)
        contrib = jnp.dot(o_h.astype(jnp.bfloat16),
                          wo[h * HEAD_DIM:(h + 1) * HEAD_DIM, :],
                          preferred_element_type=jnp.float32)         # (NL, D)
        attn = contrib if attn is None else attn + contrib
    x1 = x + attn + bo

    # ---- MLP branch: x1 + FC2(GELU(FC1(LN2(x1)))) ----
    xn2 = _layernorm(x1, ln2w, ln2b)
    h1 = jnp.dot(xn2.astype(jnp.bfloat16), w1_ref[...],
                 preferred_element_type=jnp.float32) + b1
    h1 = jax.nn.gelu(h1, approximate=True)          # tanh approx -> EUP slot
    h2 = jnp.dot(h1.astype(jnp.bfloat16), w2_ref[...],
                 preferred_element_type=jnp.float32) + b2
    out_ref[...] = x1 + h2


def make_params(key):
    ks = jax.random.split(key, 8)
    init = lambda k, shape, s=0.02: (s * jax.random.normal(k, shape)).astype(jnp.float32)
    return dict(
        ln1_w=jnp.ones((D_MODEL,), jnp.float32),
        ln1_b=jnp.zeros((D_MODEL,), jnp.float32),
        in_proj_w=init(ks[0], (3 * D_MODEL, D_MODEL)),
        in_proj_b=init(ks[1], (3 * D_MODEL,)),
        out_proj_w=init(ks[2], (D_MODEL, D_MODEL)),
        out_proj_b=init(ks[3], (D_MODEL,)),
        ln2_w=jnp.ones((D_MODEL,), jnp.float32),
        ln2_b=jnp.zeros((D_MODEL,), jnp.float32),
        fc1_w=init(ks[4], (MLP_HIDDEN, D_MODEL)),
        fc1_b=init(ks[5], (MLP_HIDDEN,)),
        fc2_w=init(ks[6], (D_MODEL, MLP_HIDDEN)),
        fc2_b=init(ks[7], (D_MODEL,)),
    )


def prepare_params(params):
    """One-time, input-independent weight prep. Run once; reuse the result across calls."""
    scale = 1.0 / (HEAD_DIM ** 0.5)
    wq, wk, wv = jnp.split(params["in_proj_w"], 3, axis=0)
    bq, bk, bv = jnp.split(params["in_proj_b"], 3, axis=0)
    wqkv_t = jnp.concatenate([wq.T * scale, wk.T, wv.T], axis=1).astype(jnp.bfloat16)  # (D, 3D)
    bqkv = jnp.concatenate([bq * scale, bk, bv])                                       # (3D,)

    def row(v):
        v = v.astype(jnp.float32)
        return jnp.pad(v, (0, MLP_HIDDEN - v.shape[0]))

    vec = jnp.stack([row(params["ln1_w"]), row(params["ln1_b"]),
                     row(bqkv), row(params["out_proj_b"]),
                     row(params["ln2_w"]), row(params["ln2_b"]),
                     row(params["fc1_b"]), row(params["fc2_b"])])        # (8, MLP_HIDDEN) f32

    return dict(
        wqkv=wqkv_t,                                                     # (D, 3D)  bf16
        wo=params["out_proj_w"].T.astype(jnp.bfloat16),                  # (D, D)   bf16
        w1=params["fc1_w"].T.astype(jnp.bfloat16),                       # (D, H)   bf16
        w2=params["fc2_w"].T.astype(jnp.bfloat16),                       # (H, D)   bf16
        vec=vec,
    )


@jax.jit
def residual_attention_block(x_lnd, attn_mask, prep):
    """x_lnd: (L, N, D) like PyTorch. attn_mask: (N, L) binary mask or None. prep: prepare_params()."""
    L, N, D = x_lnd.shape
    NL = L * N
    x = x_lnd.astype(jnp.float32).reshape(NL, D)        # free reshape; token order t = l*N + n

    if attn_mask is None:
        key_add = jnp.zeros((1, NL), jnp.float32)
    else:
        # key at flat index t = l*N + n carries (1 - attn_mask[n, l]) * -1e6
        key_add = ((1.0 - attn_mask.astype(jnp.float32).T) * -1000000.0).reshape(1, NL)

    kernel = functools.partial(_residual_block_kernel, n_batch=N)

    flops = int(
        2 * NL * D * 3 * D                                   # fused QKV
        + N_HEAD * (2 * NL * NL * HEAD_DIM * 2               # q@k^T and p@v
                    + 2 * NL * HEAD_DIM * D)                 # per-head out-proj
        + 2 * NL * D * MLP_HIDDEN * 2)                       # FC1 + FC2
    transcendentals = int(N_HEAD * (NL * NL + NL) + NL * MLP_HIDDEN + 2 * NL)
    bytes_accessed = int(
        NL * D * 4 * 2 + NL * 4 + 8 * MLP_HIDDEN * 4
        + (D * 3 * D + D * D + D * MLP_HIDDEN + MLP_HIDDEN * D) * 2)

    out = pl.pallas_call(
        kernel,
        out_shape=jax.ShapeDtypeStruct((NL, D), jnp.float32),
        cost_estimate=pl.CostEstimate(flops=flops,
                                      transcendentals=transcendentals,
                                      bytes_accessed=bytes_accessed),
    )(x, key_add, prep["wqkv"], prep["wo"], prep["w1"], prep["w2"], prep["vec"])
    return out.reshape(L, N, D)                              # free reshape back to (L, N, D)


def reference(x_lnd, attn_mask, params):
    """Pure-JAX reference mirroring the PyTorch module (eval mode, exact erf GELU, f32)."""
    x = jnp.transpose(x_lnd, (1, 0, 2)).astype(jnp.float32)            # (N, L, D)
    N, L, D = x.shape
    if attn_mask is None:
        add_mask = jnp.zeros((N, 1, L), jnp.float32)
    else:
        add_mask = ((1.0 - attn_mask.astype(jnp.float32)) * -1000000.0).reshape(N, 1, L)

    def ln(v, w, b):
        mu = jnp.mean(v, axis=-1, keepdims=True)
        var = jnp.mean((v - mu) ** 2, axis=-1, keepdims=True)
        return (v - mu) * jax.lax.rsqrt(var + LN_EPS) * w + b

    wq, wk, wv = jnp.split(params["in_proj_w"], 3, axis=0)
    bq, bk, bv = jnp.split(params["in_proj_b"], 3, axis=0)
    xn = ln(x, params["ln1_w"], params["ln1_b"])
    q = xn @ wq.T + bq
    k = xn @ wk.T + bk
    v = xn @ wv.T + bv
    qh = q.reshape(N, L, N_HEAD, HEAD_DIM) * (HEAD_DIM ** -0.5)
    kh = k.reshape(N, L, N_HEAD, HEAD_DIM)
    vh = v.reshape(N, L, N_HEAD, HEAD_DIM)
    s = jnp.einsum("nqhd,nkhd->nhqk", qh, kh) + add_mask[:, None, :, :]
    p = jax.nn.softmax(s, axis=-1)
    o = jnp.einsum("nhqk,nkhd->nqhd", p, vh).reshape(N, L, D)
    attn = o @ params["out_proj_w"].T + params["out_proj_b"]
    x1 = x + attn
    xn2 = ln(x1, params["ln2_w"], params["ln2_b"])
    h = jax.nn.gelu(xn2 @ params["fc1_w"].T + params["fc1_b"], approximate=False)
    out = x1 + (h @ params["fc2_w"].T + params["fc2_b"])
    return jnp.transpose(out, (1, 0, 2))


if __name__ == "__main__":
    key = jax.random.PRNGKey(0)
    kx, kp = jax.random.split(key)
    x = jax.random.normal(kx, (SEQ, BATCH, D_MODEL), jnp.float32)      # (L, N, D) like PyTorch
    attn_mask = jnp.ones((BATCH, SEQ), jnp.float32).at[1, -1].set(0.0)
    params = make_params(kp)
    prep = prepare_params(params)                                      # one-time host prep

    out = residual_attention_block(x, attn_mask, prep)
    out = jax.block_until_ready(out)

    ref = reference(x, attn_mask, params)
    assert out.shape == (SEQ, BATCH, D_MODEL)
    # bf16 MXU operands + tanh-GELU + approx reciprocal vs the exact erf/f32 reference: ~1e-3.
    assert jnp.allclose(out, ref, atol=5e-3, rtol=5e-3), "mismatch vs JAX reference"
    print("KERNEL_OK")
</pallas_src>

<mosaic_0001>
module attributes {stable_mosaic.version = 11 : i64} {
  func.func @_residual_block_kernel(%arg0: memref<16x32xf32, #tpu.memory_space<vmem>>, %arg1: memref<1x16xf32, #tpu.memory_space<vmem>>, %arg2: memref<32x96xbf16, #tpu.memory_space<vmem>>, %arg3: memref<32x32xbf16, #tpu.memory_space<vmem>>, %arg4: memref<32x128xbf16, #tpu.memory_space<vmem>>, %arg5: memref<128x32xbf16, #tpu.memory_space<vmem>>, %arg6: memref<8x128xf32, #tpu.memory_space<vmem>>, %arg7: memref<16x32xf32, #tpu.memory_space<vmem>>) attributes {dimension_semantics = [], scalar_prefetch = 0 : i64, scratch_operands = 0 : i64, tpu.core_type = #tpu.core_type<tc>} {
    %c0 = arith.constant 0 : index
    %c0_0 = arith.constant 0 : index
    %0 = vector.load %arg0[%c0, %c0_0] : memref<16x32xf32, #tpu.memory_space<vmem>>, vector<16x32xf32>
    %c0_1 = arith.constant 0 : index
    %c0_2 = arith.constant 0 : index
    %1 = vector.load %arg6[%c0_1, %c0_2] : memref<8x128xf32, #tpu.memory_space<vmem>>, vector<8x128xf32>
    %2 = vector.extract_strided_slice %1 {offsets = [0, 0], sizes = [1, 32], strides = [1, 1]} : vector<8x128xf32> to vector<1x32xf32>
    %3 = vector.extract_strided_slice %1 {offsets = [1, 0], sizes = [1, 32], strides = [1, 1]} : vector<8x128xf32> to vector<1x32xf32>
    %4 = vector.extract_strided_slice %1 {offsets = [2, 0], sizes = [1, 96], strides = [1, 1]} : vector<8x128xf32> to vector<1x96xf32>
    %5 = vector.extract_strided_slice %1 {offsets = [3, 0], sizes = [1, 32], strides = [1, 1]} : vector<8x128xf32> to vector<1x32xf32>
    %6 = vector.extract_strided_slice %1 {offsets = [4, 0], sizes = [1, 32], strides = [1, 1]} : vector<8x128xf32> to vector<1x32xf32>
    %7 = vector.extract_strided_slice %1 {offsets = [5, 0], sizes = [1, 32], strides = [1, 1]} : vector<8x128xf32> to vector<1x32xf32>
    %8 = vector.extract_strided_slice %1 {offsets = [6, 0], sizes = [1, 128], strides = [1, 1]} : vector<8x128xf32> to vector<1x128xf32>
    %9 = vector.extract_strided_slice %1 {offsets = [7, 0], sizes = [1, 32], strides = [1, 1]} : vector<8x128xf32> to vector<1x32xf32>
    %10 = tpu.iota {dimensions = array<i32: 0>} : vector<16x16xi32>
    %11 = tpu.iota {dimensions = array<i32: 1>} : vector<16x16xi32>
    %c2_i32 = arith.constant 2 : i32
    %c0_i32 = arith.constant 0 : i32
    %12 = arith.cmpi eq, %c2_i32, %c0_i32 : i32
    %c1_i32 = arith.constant 1 : i32
    %13 = arith.select %12, %c1_i32, %c2_i32 : i32
    %14 = vector.broadcast %13 : i32 to vector<16x16xi32>
    %15 = arith.remsi %10, %14 : vector<16x16xi32>
    %c0_i32_3 = arith.constant 0 : i32
    %16 = vector.broadcast %c0_i32_3 : i32 to vector<16x16xi32>
    %17 = arith.cmpi ne, %15, %16 : vector<16x16xi32>
    %c0_i32_4 = arith.constant 0 : i32
    %18 = vector.broadcast %c0_i32_4 : i32 to vector<16x16xi32>
    %19 = arith.cmpi slt, %15, %18 : vector<16x16xi32>
    %c0_i32_5 = arith.constant 0 : i32
    %20 = arith.cmpi slt, %13, %c0_i32_5 : i32
    %21 = vector.broadcast %20 : i1 to vector<16x16xi1>
    %22 = vector.broadcast %21 : vector<16x16xi1> to vector<16x16xi1>
    %23 = arith.xori %19, %22 : vector<16x16xi1>
    %24 = arith.andi %23, %17 : vector<16x16xi1>
    %25 = vector.broadcast %13 : i32 to vector<16x16xi32>
    %26 = arith.addi %15, %25 : vector<16x16xi32>
    %27 = arith.select %24, %26, %15 : vector<16x16xi1>, vector<16x16xi32>
    %c2_i32_6 = arith.constant 2 : i32
    %c0_i32_7 = arith.constant 0 : i32
    %28 = arith.cmpi eq, %c2_i32_6, %c0_i32_7 : i32
    %c1_i32_8 = arith.constant 1 : i32
    %29 = arith.select %28, %c1_i32_8, %c2_i32_6 : i32
    %30 = vector.broadcast %29 : i32 to vector<16x16xi32>
    %31 = arith.remsi %11, %30 : vector<16x16xi32>
    %c0_i32_9 = arith.constant 0 : i32
    %32 = vector.broadcast %c0_i32_9 : i32 to vector<16x16xi32>
    %33 = arith.cmpi ne, %31, %32 : vector<16x16xi32>
    %c0_i32_10 = arith.constant 0 : i32
    %34 = vector.broadcast %c0_i32_10 : i32 to vector<16x16xi32>
    %35 = arith.cmpi slt, %31, %34 : vector<16x16xi32>
    %c0_i32_11 = arith.constant 0 : i32
    %36 = arith.cmpi slt, %29, %c0_i32_11 : i32
    %37 = vector.broadcast %36 : i1 to vector<16x16xi1>
    %38 = vector.broadcast %37 : vector<16x16xi1> to vector<16x16xi1>
    %39 = arith.xori %35, %38 : vector<16x16xi1>
    %40 = arith.andi %39, %33 : vector<16x16xi1>
    %41 = vector.broadcast %29 : i32 to vector<16x16xi32>
    %42 = arith.addi %31, %41 : vector<16x16xi32>
    %43 = arith.select %40, %42, %31 : vector<16x16xi1>, vector<16x16xi32>
    %44 = arith.cmpi eq, %27, %43 : vector<16x16xi32>
    %c0_12 = arith.constant 0 : index
    %c0_13 = arith.constant 0 : index
    %45 = vector.load %arg1[%c0_12, %c0_13] : memref<1x16xf32, #tpu.memory_space<vmem>>, vector<1x16xf32>
    %cst = arith.constant -1.000000e+09 : f32
    %46 = vector.shape_cast %45 : vector<1x16xf32> to vector<1x16xf32>
    %47 = vector.broadcast %46 : vector<1x16xf32> to vector<16x16xf32>
    %48 = vector.broadcast %cst : f32 to vector<16x16xf32>
    %49 = arith.select %44, %47, %48 : vector<16x16xi1>, vector<16x16xf32>
    %cst_14 = arith.constant dense<0.000000e+00> : vector<16xf32>
    %50 = vector.multi_reduction <add>, %0, %cst_14 [1] : vector<16x32xf32> to vector<16xf32>
    %51 = vector.shape_cast %50 : vector<16xf32> to vector<16x1xf32>
    %cst_15 = arith.constant 3.200000e+01 : f32
    %52 = vector.broadcast %cst_15 : f32 to vector<16x1xf32>
    %53 = arith.divf %51, %52 : vector<16x1xf32>
    %54 = vector.broadcast %53 : vector<16x1xf32> to vector<16x32xf32>
    %55 = arith.subf %0, %54 : vector<16x32xf32>
    %56 = arith.mulf %55, %55 : vector<16x32xf32>
    %cst_16 = arith.constant dense<0.000000e+00> : vector<16xf32>
    %57 = vector.multi_reduction <add>, %56, %cst_16 [1] : vector<16x32xf32> to vector<16xf32>
    %58 = vector.shape_cast %57 : vector<16xf32> to vector<16x1xf32>
    %cst_17 = arith.constant 3.200000e+01 : f32
    %59 = vector.broadcast %cst_17 : f32 to vector<16x1xf32>
    %60 = arith.divf %58, %59 : vector<16x1xf32>
    %61 = vector.broadcast %53 : vector<16x1xf32> to vector<16x32xf32>
    %62 = arith.subf %0, %61 : vector<16x32xf32>
    %cst_18 = arith.constant 9.99999974E-6 : f32
    %63 = vector.broadcast %cst_18 : f32 to vector<16x1xf32>
    %64 = arith.addf %60, %63 : vector<16x1xf32>
    %65 = math.rsqrt %64 : vector<16x1xf32>
    %66 = vector.broadcast %65 : vector<16x1xf32> to vector<16x32xf32>
    %67 = arith.mulf %62, %66 : vector<16x32xf32>
    %68 = vector.broadcast %2 : vector<1x32xf32> to vector<16x32xf32>
    %69 = arith.mulf %67, %68 : vector<16x32xf32>
    %70 = vector.broadcast %3 : vector<1x32xf32> to vector<16x32xf32>
    %71 = arith.addf %69, %70 : vector<16x32xf32>
    %72 = arith.truncf %71 : vector<16x32xf32> to vector<16x32xbf16>
    %c0_19 = arith.constant 0 : index
    %c0_20 = arith.constant 0 : index
    %73 = vector.load %arg2[%c0_19, %c0_20] : memref<32x96xbf16, #tpu.memory_space<vmem>>, vector<32x96xbf16>
    %cst_21 = arith.constant dense<0.000000e+00> : vector<16x96xf32>
    %74 = tpu.matmul %72, %73, %cst_21 {dimension_numbers = #tpu.dot_dimension_numbers<[1], [0], [0], [1], [0, 0, 1, 1], [], []>} : vector<16x32xbf16>, vector<32x96xbf16>, vector<16x96xf32> -> vector<16x96xf32>
    %75 = vector.broadcast %4 : vector<1x96xf32> to vector<16x96xf32>
    %76 = arith.addf %74, %75 : vector<16x96xf32>
    %77 = arith.truncf %76 : vector<16x96xf32> to vector<16x96xbf16>
    %c0_22 = arith.constant 0 : index
    %c0_23 = arith.constant 0 : index
    %78 = vector.load %arg3[%c0_22, %c0_23] : memref<32x32xbf16, #tpu.memory_space<vmem>>, vector<32x32xbf16>
    %79 = vector.extract_strided_slice %77 {offsets = [0, 0], sizes = [16, 8], strides = [1, 1]} : vector<16x96xbf16> to vector<16x8xbf16>
    %80 = vector.extract_strided_slice %77 {offsets = [0, 32], sizes = [16, 8], strides = [1, 1]} : vector<16x96xbf16> to vector<16x8xbf16>
    %81 = vector.extract_strided_slice %77 {offsets = [0, 64], sizes = [16, 8], strides = [1, 1]} : vector<16x96xbf16> to vector<16x8xbf16>
    %cst_24 = arith.constant dense<0.000000e+00> : vector<16x16xf32>
    %82 = tpu.matmul %79, %80, %cst_24 {dimension_numbers = #tpu.dot_dimension_numbers<[1], [1], [0], [0], [0, 0, 1, 0], [], []>} : vector<16x8xbf16>, vector<16x8xbf16>, vector<16x16xf32> -> vector<16x16xf32>
    %83 = arith.addf %82, %49 : vector<16x16xf32>
    %cst_25 = arith.constant dense<0xFF800000> : vector<16xf32>
    %84 = vector.multi_reduction <maximumf>, %83, %cst_25 [1] : vector<16x16xf32> to vector<16xf32>
    %85 = vector.shape_cast %84 : vector<16xf32> to vector<16x1xf32>
    %86 = vector.broadcast %85 : vector<16x1xf32> to vector<16x16xf32>
    %87 = arith.subf %83, %86 : vector<16x16xf32>
    %88 = math.exp %87 : vector<16x16xf32>
    %cst_26 = arith.constant dense<0.000000e+00> : vector<16xf32>
    %89 = vector.multi_reduction <add>, %88, %cst_26 [1] : vector<16x16xf32> to vector<16xf32>
    %90 = vector.shape_cast %89 : vector<16xf32> to vector<16x1xf32>
    %91 = tpu.reciprocal %90 {approx = true} : vector<16x1xf32> -> vector<16x1xf32>
    %92 = vector.broadcast %91 : vector<16x1xf32> to vector<16x16xf32>
    %93 = arith.mulf %88, %92 : vector<16x16xf32>
    %94 = arith.truncf %93 : vector<16x16xf32> to vector<16x16xbf16>
    %cst_27 = arith.constant dense<0.000000e+00> : vector<16x8xf32>
    %95 = tpu.matmul %94, %81, %cst_27 {dimension_numbers = #tpu.dot_dimension_numbers<[1], [0], [0], [1], [0, 0, 1, 1], [], []>} : vector<16x16xbf16>, vector<16x8xbf16>, vector<16x8xf32> -> vector<16x8xf32>
    %96 = arith.truncf %95 : vector<16x8xf32> to vector<16x8xbf16>
    %97 = vector.extract_strided_slice %78 {offsets = [0, 0], sizes = [8, 32], strides = [1, 1]} : vector<32x32xbf16> to vector<8x32xbf16>
    %cst_28 = arith.constant dense<0.000000e+00> : vector<16x32xf32>
    %98 = tpu.matmul %96, %97, %cst_28 {dimension_numbers = #tpu.dot_dimension_numbers<[1], [0], [0], [1], [0, 0, 1, 1], [], []>} : vector<16x8xbf16>, vector<8x32xbf16>, vector<16x32xf32> -> vector<16x32xf32>
    %99 = vector.extract_strided_slice %77 {offsets = [0, 8], sizes = [16, 8], strides = [1, 1]} : vector<16x96xbf16> to vector<16x8xbf16>
    %100 = vector.extract_strided_slice %77 {offsets = [0, 40], sizes = [16, 8], strides = [1, 1]} : vector<16x96xbf16> to vector<16x8xbf16>
    %101 = vector.extract_strided_slice %77 {offsets = [0, 72], sizes = [16, 8], strides = [1, 1]} : vector<16x96xbf16> to vector<16x8xbf16>
    %cst_29 = arith.constant dense<0.000000e+00> : vector<16x16xf32>
    %102 = tpu.matmul %99, %100, %cst_29 {dimension_numbers = #tpu.dot_dimension_numbers<[1], [1], [0], [0], [0, 0, 1, 0], [], []>} : vector<16x8xbf16>, vector<16x8xbf16>, vector<16x16xf32> -> vector<16x16xf32>
    %103 = arith.addf %102, %49 : vector<16x16xf32>
    %cst_30 = arith.constant dense<0xFF800000> : vector<16xf32>
    %104 = vector.multi_reduction <maximumf>, %103, %cst_30 [1] : vector<16x16xf32> to vector<16xf32>
    %105 = vector.shape_cast %104 : vector<16xf32> to vector<16x1xf32>
    %106 = vector.broadcast %105 : vector<16x1xf32> to vector<16x16xf32>
    %107 = arith.subf %103, %106 : vector<16x16xf32>
    %108 = math.exp %107 : vector<16x16xf32>
    %cst_31 = arith.constant dense<0.000000e+00> : vector<16xf32>
    %109 = vector.multi_reduction <add>, %108, %cst_31 [1] : vector<16x16xf32> to vector<16xf32>
    %110 = vector.shape_cast %109 : vector<16xf32> to vector<16x1xf32>
    %111 = tpu.reciprocal %110 {approx = true} : vector<16x1xf32> -> vector<16x1xf32>
    %112 = vector.broadcast %111 : vector<16x1xf32> to vector<16x16xf32>
    %113 = arith.mulf %108, %112 : vector<16x16xf32>
    %114 = arith.truncf %113 : vector<16x16xf32> to vector<16x16xbf16>
    %cst_32 = arith.constant dense<0.000000e+00> : vector<16x8xf32>
    %115 = tpu.matmul %114, %101, %cst_32 {dimension_numbers = #tpu.dot_dimension_numbers<[1], [0], [0], [1], [0, 0, 1, 1], [], []>} : vector<16x16xbf16>, vector<16x8xbf16>, vector<16x8xf32> -> vector<16x8xf32>
    %116 = arith.truncf %115 : vector<16x8xf32> to vector<16x8xbf16>
    %117 = vector.extract_strided_slice %78 {offsets = [8, 0], sizes = [8, 32], strides = [1, 1]} : vector<32x32xbf16> to vector<8x32xbf16>
    %cst_33 = arith.constant dense<0.000000e+00> : vector<16x32xf32>
    %118 = tpu.matmul %116, %117, %cst_33 {dimension_numbers = #tpu.dot_dimension_numbers<[1], [0], [0], [1], [0, 0, 1, 1], [], []>} : vector<16x8xbf16>, vector<8x32xbf16>, vector<16x32xf32> -> vector<16x32xf32>
    %119 = arith.addf %98, %118 : vector<16x32xf32>
    %120 = vector.extract_strided_slice %77 {offsets = [0, 16], sizes = [16, 8], strides = [1, 1]} : vector<16x96xbf16> to vector<16x8xbf16>
    %121 = vector.extract_strided_slice %77 {offsets = [0, 48], sizes = [16, 8], strides = [1, 1]} : vector<16x96xbf16> to vector<16x8xbf16>
    %122 = vector.extract_strided_slice %77 {offsets = [0, 80], sizes = [16, 8], strides = [1, 1]} : vector<16x96xbf16> to vector<16x8xbf16>
    %cst_34 = arith.constant dense<0.000000e+00> : vector<16x16xf32>
    %123 = tpu.matmul %120, %121, %cst_34 {dimension_numbers = #tpu.dot_dimension_numbers<[1], [1], [0], [0], [0, 0, 1, 0], [], []>} : vector<16x8xbf16>, vector<16x8xbf16>, vector<16x16xf32> -> vector<16x16xf32>
    %124 = arith.addf %123, %49 : vector<16x16xf32>
    %cst_35 = arith.constant dense<0xFF800000> : vector<16xf32>
    %125 = vector.multi_reduction <maximumf>, %124, %cst_35 [1] : vector<16x16xf32> to vector<16xf32>
    %126 = vector.shape_cast %125 : vector<16xf32> to vector<16x1xf32>
    %127 = vector.broadcast %126 : vector<16x1xf32> to vector<16x16xf32>
    %128 = arith.subf %124, %127 : vector<16x16xf32>
    %129 = math.exp %128 : vector<16x16xf32>
    %cst_36 = arith.constant dense<0.000000e+00> : vector<16xf32>
    %130 = vector.multi_reduction <add>, %129, %cst_36 [1] : vector<16x16xf32> to vector<16xf32>
    %131 = vector.shape_cast %130 : vector<16xf32> to vector<16x1xf32>
    %132 = tpu.reciprocal %131 {approx = true} : vector<16x1xf32> -> vector<16x1xf32>
    %133 = vector.broadcast %132 : vector<16x1xf32> to vector<16x16xf32>
    %134 = arith.mulf %129, %133 : vector<16x16xf32>
    %135 = arith.truncf %134 : vector<16x16xf32> to vector<16x16xbf16>
    %cst_37 = arith.constant dense<0.000000e+00> : vector<16x8xf32>
    %136 = tpu.matmul %135, %122, %cst_37 {dimension_numbers = #tpu.dot_dimension_numbers<[1], [0], [0], [1], [0, 0, 1, 1], [], []>} : vector<16x16xbf16>, vector<16x8xbf16>, vector<16x8xf32> -> vector<16x8xf32>
    %137 = arith.truncf %136 : vector<16x8xf32> to vector<16x8xbf16>
    %138 = vector.extract_strided_slice %78 {offsets = [16, 0], sizes = [8, 32], strides = [1, 1]} : vector<32x32xbf16> to vector<8x32xbf16>
    %cst_38 = arith.constant dense<0.000000e+00> : vector<16x32xf32>
    %139 = tpu.matmul %137, %138, %cst_38 {dimension_numbers = #tpu.dot_dimension_numbers<[1], [0], [0], [1], [0, 0, 1, 1], [], []>} : vector<16x8xbf16>, vector<8x32xbf16>, vector<16x32xf32> -> vector<16x32xf32>
    %140 = arith.addf %119, %139 : vector<16x32xf32>
    %141 = vector.extract_strided_slice %77 {offsets = [0, 24], sizes = [16, 8], strides = [1, 1]} : vector<16x96xbf16> to vector<16x8xbf16>
    %142 = vector.extract_strided_slice %77 {offsets = [0, 56], sizes = [16, 8], strides = [1, 1]} : vector<16x96xbf16> to vector<16x8xbf16>
    %143 = vector.extract_strided_slice %77 {offsets = [0, 88], sizes = [16, 8], strides = [1, 1]} : vector<16x96xbf16> to vector<16x8xbf16>
    %cst_39 = arith.constant dense<0.000000e+00> : vector<16x16xf32>
    %144 = tpu.matmul %141, %142, %cst_39 {dimension_numbers = #tpu.dot_dimension_numbers<[1], [1], [0], [0], [0, 0, 1, 0], [], []>} : vector<16x8xbf16>, vector<16x8xbf16>, vector<16x16xf32> -> vector<16x16xf32>
    %145 = arith.addf %144, %49 : vector<16x16xf32>
    %cst_40 = arith.constant dense<0xFF800000> : vector<16xf32>
    %146 = vector.multi_reduction <maximumf>, %145, %cst_40 [1] : vector<16x16xf32> to vector<16xf32>
    %147 = vector.shape_cast %146 : vector<16xf32> to vector<16x1xf32>
    %148 = vector.broadcast %147 : vector<16x1xf32> to vector<16x16xf32>
    %149 = arith.subf %145, %148 : vector<16x16xf32>
    %150 = math.exp %149 : vector<16x16xf32>
    %cst_41 = arith.constant dense<0.000000e+00> : vector<16xf32>
    %151 = vector.multi_reduction <add>, %150, %cst_41 [1] : vector<16x16xf32> to vector<16xf32>
    %152 = vector.shape_cast %151 : vector<16xf32> to vector<16x1xf32>
    %153 = tpu.reciprocal %152 {approx = true} : vector<16x1xf32> -> vector<16x1xf32>
    %154 = vector.broadcast %153 : vector<16x1xf32> to vector<16x16xf32>
    %155 = arith.mulf %150, %154 : vector<16x16xf32>
    %156 = arith.truncf %155 : vector<16x16xf32> to vector<16x16xbf16>
    %cst_42 = arith.constant dense<0.000000e+00> : vector<16x8xf32>
    %157 = tpu.matmul %156, %143, %cst_42 {dimension_numbers = #tpu.dot_dimension_numbers<[1], [0], [0], [1], [0, 0, 1, 1], [], []>} : vector<16x16xbf16>, vector<16x8xbf16>, vector<16x8xf32> -> vector<16x8xf32>
    %158 = arith.truncf %157 : vector<16x8xf32> to vector<16x8xbf16>
    %159 = vector.extract_strided_slice %78 {offsets = [24, 0], sizes = [8, 32], strides = [1, 1]} : vector<32x32xbf16> to vector<8x32xbf16>
    %cst_43 = arith.constant dense<0.000000e+00> : vector<16x32xf32>
    %160 = tpu.matmul %158, %159, %cst_43 {dimension_numbers = #tpu.dot_dimension_numbers<[1], [0], [0], [1], [0, 0, 1, 1], [], []>} : vector<16x8xbf16>, vector<8x32xbf16>, vector<16x32xf32> -> vector<16x32xf32>
    %161 = arith.addf %140, %160 : vector<16x32xf32>
    %162 = arith.addf %0, %161 : vector<16x32xf32>
    %163 = vector.broadcast %5 : vector<1x32xf32> to vector<16x32xf32>
    %164 = arith.addf %162, %163 : vector<16x32xf32>
    %cst_44 = arith.constant dense<0.000000e+00> : vector<16xf32>
    %165 = vector.multi_reduction <add>, %164, %cst_44 [1] : vector<16x32xf32> to vector<16xf32>
    %166 = vector.shape_cast %165 : vector<16xf32> to vector<16x1xf32>
    %cst_45 = arith.constant 3.200000e+01 : f32
    %167 = vector.broadcast %cst_45 : f32 to vector<16x1xf32>
    %168 = arith.divf %166, %167 : vector<16x1xf32>
    %169 = vector.broadcast %168 : vector<16x1xf32> to vector<16x32xf32>
    %170 = arith.subf %164, %169 : vector<16x32xf32>
    %171 = arith.mulf %170, %170 : vector<16x32xf32>
    %cst_46 = arith.constant dense<0.000000e+00> : vector<16xf32>
    %172 = vector.multi_reduction <add>, %171, %cst_46 [1] : vector<16x32xf32> to vector<16xf32>
    %173 = vector.shape_cast %172 : vector<16xf32> to vector<16x1xf32>
    %cst_47 = arith.constant 3.200000e+01 : f32
    %174 = vector.broadcast %cst_47 : f32 to vector<16x1xf32>
    %175 = arith.divf %173, %174 : vector<16x1xf32>
    %176 = vector.broadcast %168 : vector<16x1xf32> to vector<16x32xf32>
    %177 = arith.subf %164, %176 : vector<16x32xf32>
    %cst_48 = arith.constant 9.99999974E-6 : f32
    %178 = vector.broadcast %cst_48 : f32 to vector<16x1xf32>
    %179 = arith.addf %175, %178 : vector<16x1xf32>
    %180 = math.rsqrt %179 : vector<16x1xf32>
    %181 = vector.broadcast %180 : vector<16x1xf32> to vector<16x32xf32>
    %182 = arith.mulf %177, %181 : vector<16x32xf32>
    %183 = vector.broadcast %6 : vector<1x32xf32> to vector<16x32xf32>
    %184 = arith.mulf %182, %183 : vector<16x32xf32>
    %185 = vector.broadcast %7 : vector<1x32xf32> to vector<16x32xf32>
    %186 = arith.addf %184, %185 : vector<16x32xf32>
    %187 = arith.truncf %186 : vector<16x32xf32> to vector<16x32xbf16>
    %c0_49 = arith.constant 0 : index
    %c0_50 = arith.constant 0 : index
    %188 = vector.load %arg4[%c0_49, %c0_50] : memref<32x128xbf16, #tpu.memory_space<vmem>>, vector<32x128xbf16>
    %cst_51 = arith.constant dense<0.000000e+00> : vector<16x128xf32>
    %189 = tpu.matmul %187, %188, %cst_51 {dimension_numbers = #tpu.dot_dimension_numbers<[1], [0], [0], [1], [0, 0, 1, 1], [], []>} : vector<16x32xbf16>, vector<32x128xbf16>, vector<16x128xf32> -> vector<16x128xf32>
    %190 = vector.broadcast %8 : vector<1x128xf32> to vector<16x128xf32>
    %191 = arith.addf %189, %190 : vector<16x128xf32>
    %192 = arith.mulf %191, %191 : vector<16x128xf32>
    %193 = arith.mulf %191, %192 : vector<16x128xf32>
    %cst_52 = arith.constant 4.471500e-02 : f32
    %194 = vector.broadcast %cst_52 : f32 to vector<16x128xf32>
    %195 = arith.mulf %194, %193 : vector<16x128xf32>
    %196 = arith.addf %191, %195 : vector<16x128xf32>
    %cst_53 = arith.constant 0.797884583 : f32
    %197 = vector.broadcast %cst_53 : f32 to vector<16x128xf32>
    %198 = arith.mulf %197, %196 : vector<16x128xf32>
    %199 = math.tanh %198 : vector<16x128xf32>
    %cst_54 = arith.constant 1.000000e+00 : f32
    %200 = vector.broadcast %cst_54 : f32 to vector<16x128xf32>
    %201 = arith.addf %200, %199 : vector<16x128xf32>
    %cst_55 = arith.constant 5.000000e-01 : f32
    %202 = vector.broadcast %cst_55 : f32 to vector<16x128xf32>
    %203 = arith.mulf %202, %201 : vector<16x128xf32>
    %204 = arith.mulf %191, %203 : vector<16x128xf32>
    %205 = arith.truncf %204 : vector<16x128xf32> to vector<16x128xbf16>
    %c0_56 = arith.constant 0 : index
    %c0_57 = arith.constant 0 : index
    %206 = vector.load %arg5[%c0_56, %c0_57] : memref<128x32xbf16, #tpu.memory_space<vmem>>, vector<128x32xbf16>
    %cst_58 = arith.constant dense<0.000000e+00> : vector<16x32xf32>
    %207 = tpu.matmul %205, %206, %cst_58 {dimension_numbers = #tpu.dot_dimension_numbers<[1], [0], [0], [1], [0, 0, 1, 1], [], []>} : vector<16x128xbf16>, vector<128x32xbf16>, vector<16x32xf32> -> vector<16x32xf32>
    %208 = vector.broadcast %9 : vector<1x32xf32> to vector<16x32xf32>
    %209 = arith.addf %207, %208 : vector<16x32xf32>
    %210 = arith.addf %164, %209 : vector<16x32xf32>
    %c0_59 = arith.constant 0 : index
    %c0_60 = arith.constant 0 : index
    %211 = vector.load %arg7[%c0_59, %c0_60] : memref<16x32xf32, #tpu.memory_space<vmem>>, vector<16x32xf32>
    tpu.vector_store %arg7[%c0_59, %c0_60], %210 {strides = array<i32>} : memref<16x32xf32, #tpu.memory_space<vmem>>, vector<16x32xf32>,
    return
  }
}

</mosaic_0001>

<llo_original>
// kernel: residual_attention_block.1
$region0: #{residual_attention_block.1}
  #allocation0 [shape = 'u32[]', space=smem, size = 0x4, offset = 0x4, fixed_abs, tag = 'smem constant byte address 0x4 - core index']
  #allocation1 [shape = 'u32[144,128]{1,0:T(1,128)}', space=vmem, size = 0x12000, scoped, tag = 'internal scratch']
  %s0 = inlined_call_operand.vmem [shape: f32[16,32], index: 0, kind: input, shape index: {}]
  %s1 = inlined_call_operand.vmem [shape: f32[1,16], index: 1, kind: input, shape index: {}]
  %s2 = inlined_call_operand.vmem [shape: bf16[32,96], index: 2, kind: input, shape index: {}]
  %s3 = inlined_call_operand.vmem [shape: bf16[32,32], index: 3, kind: input, shape index: {}]
  %s4 = inlined_call_operand.vmem [shape: bf16[32,128], index: 4, kind: input, shape index: {}]
  %s5 = inlined_call_operand.vmem [shape: bf16[128,32], index: 5, kind: input, shape index: {}]
  %s6 = inlined_call_operand.vmem [shape: f32[8,128], index: 6, kind: input, shape index: {}]
  %s7 = inlined_call_operand.hbm [shape: f32[16,32], index: 7, kind: output, shape index: {}]
  %s8 = sld [smem:[#allocation0]]
  $region38: #{residual_attention_block.1} parent=0
    _
  %s10 = ssub.s32 1, %s8
  %s11 = scalar_select 0, %s10, %s8
  $region1: #{residual_attention_block.1} parent=0
    #allocation2 [shape = 'u8[8192]{0}', space=vmem, size = 0x2000, scoped, tag = 'output window, operand 0, single buffered']
    #allocation3 [shape = 's32[1]{0}', space=sflag, size = 0x4, scoped, tag = 'scoped memory for residual_attention_block.1']
    %12 = vsyncpa [#allocation3], 0
    // Predicated region
    $region2: #{residual_attention_block.1} parent=1 // pred_check
      _
    $region3: #{residual_attention_block.1} parent=1 // pred_check_branch
      %14 = sbr.rel (0) target = $region5
    $region4: #{residual_attention_block.1} parent=1 // pred_region
      _
    $region5: #{residual_attention_block.1} parent=1 // pred_fallthru
      _
    // Predicated region
    $region6: #{residual_attention_block.1} parent=1 // pred_check
      _
    $region7: #{residual_attention_block.1} parent=1 // pred_check_branch
      %16 = sbr.rel (0) target = $region9
    $region8: #{residual_attention_block.1} parent=1 // pred_region
      _
    $region9: #{residual_attention_block.1} parent=1 // pred_fallthru
      _
    // Predicated region
    $region10: #{residual_attention_block.1} parent=1 // pred_check
      _
    $region11: #{residual_attention_block.1} parent=1 // pred_check_branch
      %18 = sbr.rel (0) target = $region13
    $region12: #{residual_attention_block.1} parent=1 // pred_region
      _
    $region13: #{residual_attention_block.1} parent=1 // pred_fallthru
      _
    // Predicated region
    $region14: #{residual_attention_block.1} parent=1 // pred_check
      _
    $region15: #{residual_attention_block.1} parent=1 // pred_check_branch
      %20 = sbr.rel (0) target = $region17
    $region16: #{residual_attention_block.1} parent=1 // pred_region
      _
    $region17: #{residual_attention_block.1} parent=1 // pred_fallthru
      _
    // Predicated region
    $region18: #{residual_attention_block.1} parent=1 // pred_check
      _
    $region19: #{residual_attention_block.1} parent=1 // pred_check_branch
      %22 = sbr.rel (0) target = $region21
    $region20: #{residual_attention_block.1} parent=1 // pred_region
      _
    $region21: #{residual_attention_block.1} parent=1 // pred_fallthru
      _
    // Predicated region
    $region22: #{residual_attention_block.1} parent=1 // pred_check
      _
    $region23: #{residual_attention_block.1} parent=1 // pred_check_branch
      %24 = sbr.rel (0) target = $region25
    $region24: #{residual_attention_block.1} parent=1 // pred_region
      _
    $region25: #{residual_attention_block.1} parent=1 // pred_fallthru
      _
    // Predicated region
    $region26: #{residual_attention_block.1} parent=1 // pred_check
      _
    $region27: #{residual_attention_block.1} parent=1 // pred_check_branch
      %26 = sbr.rel (0) target = $region29
    $region28: #{residual_attention_block.1} parent=1 // pred_region
      _
    $region29: #{residual_attention_block.1} parent=1 // pred_fallthru
      _
    %v28 = vld [vmem:[%s0] sm:$0xff]
    %v29 = vld [vmem:[%s0 + $0x8] sm:$0xff]
    %v30 = vld [vmem:[%s6] sm:$0xff]
    %v31 = vlaneseq
    %v32 = vshrl.u32 %v31, 7
    %v33 = vadd.s32 %v32, 8
    %v34 = vlaneseq
    %v35 = vand.u32 %v34, 127
    %vm36 = vcmp.lt.s32.totalorder %v32, 0
    %v37 = vsub.s32 0, %v32
    %v38 = vsel %vm36, %v37, %v32
    %v39 = vshrl.u32 %v38, 1
    %v40 = vand.u32 %v38, 1
    %v41 = vsub.s32 0, %v40
    %v42 = vsel %vm36, %v41, %v40
    %vm43 = vcmp.lt.s32.totalorder %v33, 0
    %v44 = vsub.s32 0, %v33
    %v45 = vsel %vm43, %v44, %v33
    %v46 = vshrl.u32 %v45, 1
    %v47 = vand.u32 %v45, 1
    %v48 = vsub.s32 0, %v47
    %v49 = vsel %vm43, %v48, %v47
    %vm50 = vcmp.ne.s32.totalorder %v42, 0
    %vm51 = vcmp.ne.s32.totalorder %v49, 0
    %vm52 = vcmp.lt.s32.totalorder %v42, 0
    %vm53 = vcmp.lt.s32.totalorder %v49, 0
    %vm54 = vmand %vm52, %vm50
    %vm55 = vmand %vm53, %vm51
    %v56 = vadd.s32 %v42, 2
    %v57 = vadd.s32 %v49, 2
    %v58 = vsel %vm54, %v56, %v42
    %v59 = vsel %vm55, %v57, %v49
    %vm60 = vcmp.lt.s32.totalorder %v35, 0
    %v61 = vsub.s32 0, %v35
    %v62 = vsel %vm60, %v61, %v35
    %v63 = vshrl.u32 %v62, 1
    %v64 = vand.u32 %v62, 1
    %v65 = vsub.s32 0, %v64
    %v66 = vsel %vm60, %v65, %v64
    %vm67 = vcmp.ne.s32.totalorder %v66, 0
    %vm68 = vcmp.lt.s32.totalorder %v66, 0
    %vm69 = vmand %vm68, %vm67
    %v70 = vadd.s32 %v66, 2
    %v71 = vsel %vm69, %v70, %v66
    %vm72 = vcmp.eq.s32.totalorder %v58, %v71
    %vm73 = vcmp.eq.s32.totalorder %v59, %v71
    %v74 = vld [vmem:[%s1] sm:$0x1]
    %v76 = vlaneseq
    %v77 = vshrl.u32 %v76, 7
    %v78 = vsub.s32 0, %v77
    %v79 = vrot.slane %v74, %v78
    %v81 = vsel %vm72, %v79, -1e+09
    %v82 = vsel %vm73, %v79, -1e+09
    %vm83 = vcmask 261120
    %v84 = vsel %vm83, %v28, 0.0
    %85 = vadd.xlane.f32.xlu0 %v84
    %v86 = vpop.xlane.xlu0 %85
    %v87 = vsel %vm83, %v29, 0.0
    %88 = vadd.xlane.f32.xlu0 %v87
    %v89 = vpop.xlane.xlu0 %88
    %v90 = vrcp.pop 32.0
    %v91 = vmul.f32 %v86, %v90
    %v92 = vmul.f32 %v89, %v90
    %v93 = vsub.f32 %v28, %v91
    %v94 = vsub.f32 %v29, %v92
    %v95 = vmul.f32 %v93, %v93
    %v96 = vmul.f32 %v94, %v94
    %v97 = vsel %vm83, %v95, 0.0
    %98 = vadd.xlane.f32.xlu0 %v97
    %v99 = vpop.xlane.xlu0 %98
    %v100 = vsel %vm83, %v96, 0.0
    %101 = vadd.xlane.f32.xlu0 %v100
    %v102 = vpop.xlane.xlu0 %101
    %v103 = vmul.f32 %v99, %v90
    %v104 = vmul.f32 %v102, %v90
    %v105 = vadd.f32 %v103, 1e-05
    %v106 = vadd.f32 %v104, 1e-05
    %v107 = vrsqrt.pop %v105
    %v108 = vrsqrt.pop %v106
    %v109 = vmul.f32 %v93, %v107
    %v110 = vmul.f32 %v94, %v108
    %v111 = vlaneseq
    %v112 = vshrl.u32 %v111, 7
    %v113 = vsub.s32 0, %v112
    %v114 = vrot.slane %v30, %v113
    %v115 = vmul.f32 %v109, %v114
    %v116 = vmul.f32 %v110, %v114
    %v117 = vlaneseq
    %v118 = vshrl.u32 %v117, 7
    %v119 = vsub.s32 1, %v118
    %v120 = vrot.slane %v30, %v119
    %v121 = vadd.f32 %v115, %v120
    %v122 = vadd.f32 %v116, %v120
    %v123 = vpack.c.bf16 %v122, %v121
    %v124 = vld [vmem:[%s2] sm:$0xf]
    %v125 = vld [vmem:[%s2 + $0x4] sm:$0xf]
    %v126 = vld [vmem:[%s2 + $0x8] sm:$0xf]
    %v127 = vld [vmem:[%s2 + $0xc] sm:$0xf]
    %v128 = vlaneseq
    %v129 = vshrl.u32 %v128, 7
    %v130 = vsub.s32 2, %v129
    %v131 = vrot.slane %v30, %v130
    %v136 = vunpack.c.l.b16 %v124
    %v137 = vunpack.c.l.b16 %v125
    %v138 = vunpack.c.l.b16 %v126
    %v139 = vunpack.c.l.b16 %v127
    %v140 = vpack.c.b16 %v137, %v136
    %v141 = vpack.c.b16 %v139, %v138
    %v145 = vsel %vm83, %v123, 0
    %147 = vmatprep.subr.bf16.mxu0 0
    %148 = vmatpush1.bf16.msra.mxu0 0
    %149 = vmatprep.subr.bf16.mxu0 0
    %150 = vmatpush1.bf16.msra.mxu0 0
    %151 = vmatprep.subr.bf16.mxu0 0
    %152 = vmatpush1.bf16.msra.mxu0 0
    %153 = vmatprep.subr.bf16.mxu0 0
    %154 = vmatpush1.bf16.msra.mxu0 0
    %155 = vmatprep.subr.bf16.mxu0 0
    %156 = vmatpush1.bf16.msra.mxu0 0
    %157 = vmatprep.subr.bf16.mxu0 0
    %158 = vmatpush1.bf16.msra.mxu0 0
    %159 = vmatprep.subr.bf16.mxu0 0
    %160 = vmatpush1.bf16.msra.mxu0 %v141
    %161 = vmatprep.subr.bf16.mxu0 0
    %162 = vmatpush1.bf16.msra.mxu0 %v140
    %163 = vmatprep.subr.bf16.mxu0 0
    %164 = vmatpush2.bf16.msra.mxu0 0
    %165 = vmatprep.subr.bf16.mxu0 0
    %166 = vmatpush2.bf16.msra.mxu0 0
    %167 = vmatprep.subr.bf16.mxu0 0
    %168 = vmatpush2.bf16.msra.mxu0 0
    %169 = vmatprep.subr.bf16.mxu0 0
    %170 = vmatpush2.bf16.msra.mxu0 0
    %171 = vmatprep.subr.bf16.mxu0 0
    %172 = vmatpush2.bf16.msra.mxu0 0
    %173 = vmatprep.subr.bf16.mxu0 0
    %174 = vmatpush2.bf16.msra.mxu0 0
    %175 = vmatprep.subr.bf16.mxu0 0
    %176 = vmatpush2.bf16.msra.mxu0 0
    %177 = vmatprep.subr.bf16.mxu0 0
    %178 = vmatpush2.bf16.msra.mxu0 0
    %179 = vmatprep.mubr.bf16.mxu0 0
    %180 = vmatmul.mubr.bf16.gmra.mxu0 %v145
    %v181 = vpop.f32.mrf.mxu0
    %v182 = vadd.f32 %v131, %v181
    %v183 = vpop.f32.mrf.mxu0
    %v184 = vpop.f32.mrf.mxu0
    %v185 = vadd.f32 %v131, %v184
    %v186 = vpop.f32.mrf.mxu0
    %187 = vdwg.mxu0
    %v188 = vpack.c.bf16 %v185, %v182
    %v189 = vld [vmem:[%s3] sm:$0xf]
    %v190 = vld [vmem:[%s3 + $0x4] sm:$0xf]
    %v191 = vld [vmem:[%s3 + $0x8] sm:$0xf]
    %v192 = vld [vmem:[%s3 + $0xc] sm:$0xf]
    %194 = vrot.lane.b32.xlu0 %v188, 96
    %v195 = vpop.permute.xlu0 %194
    %vm196 = vcmask 64512
    %v198 = vsel %vm196, %v188, 0
    %v201 = vsel %vm196, %v195, 0
    %203 = vmatprep.subr.bf16.mxu0 0
    %204 = vmatpush1.bf16.xpose.msra.mxu0 0
    %205 = vmatprep.subr.bf16.mxu0 0
    %206 = vmatpush1.bf16.xpose.msra.mxu0 0
    %207 = vmatprep.subr.bf16.mxu0 0
    %208 = vmatpush1.bf16.xpose.msra.mxu0 0
    %209 = vmatprep.subr.bf16.mxu0 0
    %210 = vmatpush1.bf16.xpose.msra.mxu0 0
    %211 = vmatprep.subr.bf16.mxu0 0
    %212 = vmatpush1.bf16.xpose.msra.mxu0 0
    %213 = vmatprep.subr.bf16.mxu0 0
    %214 = vmatpush1.bf16.xpose.msra.mxu0 0
    %215 = vmatprep.subr.bf16.mxu0 0
    %216 = vmatpush1.bf16.xpose.msra.mxu0 0
    %217 = vmatprep.subr.bf16.mxu0 0
    %218 = vmatpush1.bf16.xpose.msra.mxu0 %v201
    %219 = vmatprep.subr.bf16.mxu0 0
    %220 = vmatpush2.bf16.xpose.msra.mxu0 0
    %221 = vmatprep.subr.bf16.mxu0 0
    %222 = vmatpush2.bf16.xpose.msra.mxu0 0
    %223 = vmatprep.subr.bf16.mxu0 0
    %224 = vmatpush2.bf16.xpose.msra.mxu0 0
    %225 = vmatprep.subr.bf16.mxu0 0
    %226 = vmatpush2.bf16.xpose.msra.mxu0 0
    %227 = vmatprep.subr.bf16.mxu0 0
    %228 = vmatpush2.bf16.xpose.msra.mxu0 0
    %229 = vmatprep.subr.bf16.mxu0 0
    %230 = vmatpush2.bf16.xpose.msra.mxu0 0
    %231 = vmatprep.subr.bf16.mxu0 0
    %232 = vmatpush2.bf16.xpose.msra.mxu0 0
    %233 = vmatprep.subr.bf16.mxu0 0
    %234 = vmatpush2.bf16.xpose.msra.mxu0 0
    %235 = vmatprep.mubr.bf16.mxu0 0
    %236 = vmatmul.mubr.bf16.gmra.mxu0 %v198
    %v237 = vpop.f32.mrf.mxu0
    %v238 = vadd.f32 %v81, %v237
    %v239 = vpop.f32.mrf.mxu0
    %v240 = vpop.f32.mrf.mxu0
    %v241 = vadd.f32 %v82, %v240
    %v242 = vpop.f32.mrf.mxu0
    %243 = vdwg.mxu0
    %vm244 = vcmask 130048
    %v245 = vsel %vm244, %v238, -inf
    %246 = vmax.xlane.f32.xlu0 %v245
    %v247 = vpop.xlane.xlu0 %246
    %v248 = vsel %vm244, %v241, -inf
    %249 = vmax.xlane.f32.xlu0 %v248
    %v250 = vpop.xlane.xlu0 %249
    %v251 = vsub.f32 %v238, %v247
    %v252 = vsub.f32 %v241, %v250
    %v253 = vmul.f32 %v251, 1.442695
    %v254 = vpow.pop %v253
    %v255 = vmul.f32 %v252, 1.442695
    %v256 = vpow.pop %v255
    %v257 = vsel %vm244, %v254, 0.0
    %258 = vadd.xlane.f32.xlu0 %v257
    %v259 = vpop.xlane.xlu0 %258
    %v260 = vsel %vm244, %v256, 0.0
    %261 = vadd.xlane.f32.xlu0 %v260
    %v262 = vpop.xlane.xlu0 %261
    %v263 = vrcp.pop %v259
    %v264 = vrcp.pop %v262
    %v265 = vmul.f32 %v254, %v263
    %v266 = vmul.f32 %v256, %v264
    %v267 = vpack.c.bf16 %v266, %v265
    %268 = vrot.lane.b32.xlu0 %v188, 64
    %v269 = vpop.permute.xlu0 %268
    %v272 = vsel %vm244, %v267, 0
    %274 = vmatprep.subr.bf16.mxu0 0
    %275 = vmatpush1.bf16.msra.mxu0 0
    %276 = vmatprep.subr.bf16.mxu0 0
    %277 = vmatpush1.bf16.msra.mxu0 0
    %278 = vmatprep.subr.bf16.mxu0 0
    %279 = vmatpush1.bf16.msra.mxu0 0
    %280 = vmatprep.subr.bf16.mxu0 0
    %281 = vmatpush1.bf16.msra.mxu0 0
    %282 = vmatprep.subr.bf16.mxu0 0
    %283 = vmatpush1.bf16.msra.mxu0 0
    %284 = vmatprep.subr.bf16.mxu0 0
    %285 = vmatpush1.bf16.msra.mxu0 0
    %286 = vmatprep.subr.bf16.mxu0 0
    %287 = vmatpush1.bf16.msra.mxu0 0
    %288 = vmatprep.subr.bf16.mxu0 0
    %289 = vmatpush1.bf16.msra.mxu0 %v269
    %290 = vmatprep.subr.bf16.mxu0 0
    %291 = vmatpush2.bf16.msra.mxu0 0
    %292 = vmatprep.subr.bf16.mxu0 0
    %293 = vmatpush2.bf16.msra.mxu0 0
    %294 = vmatprep.subr.bf16.mxu0 0
    %295 = vmatpush2.bf16.msra.mxu0 0
    %296 = vmatprep.subr.bf16.mxu0 0
    %297 = vmatpush2.bf16.msra.mxu0 0
    %298 = vmatprep.subr.bf16.mxu0 0
    %299 = vmatpush2.bf16.msra.mxu0 0
    %300 = vmatprep.subr.bf16.mxu0 0
    %301 = vmatpush2.bf16.msra.mxu0 0
    %302 = vmatprep.subr.bf16.mxu0 0
    %303 = vmatpush2.bf16.msra.mxu0 0
    %304 = vmatprep.subr.bf16.mxu0 0
    %305 = vmatpush2.bf16.msra.mxu0 0
    %306 = vmatprep.mubr.bf16.mxu0 0
    %307 = vmatmul.mubr.bf16.gmra.mxu0 %v272
    %v308 = vpop.f32.mrf.mxu0
    %v309 = vadd.f32 0.0, %v308
    %v310 = vpop.f32.mrf.mxu0
    %v311 = vpop.f32.mrf.mxu0
    %v312 = vadd.f32 0.0, %v311
    %v313 = vpop.f32.mrf.mxu0
    %314 = vdwg.mxu0
    %v315 = vpack.c.bf16 %v312, %v309
    %316 = vrot.lane.b32.xlu0 %v188, 120
    %v317 = vpop.permute.xlu0 %316
    %318 = vrot.lane.b32.xlu0 %v188, 88
    %v319 = vpop.permute.xlu0 %318
    %v321 = vsel %vm196, %v317, 0
    %v324 = vsel %vm196, %v319, 0
    %326 = vmatprep.subr.bf16.mxu0 0
    %327 = vmatpush1.bf16.xpose.msra.mxu0 0
    %328 = vmatprep.subr.bf16.mxu0 0
    %329 = vmatpush1.bf16.xpose.msra.mxu0 0
    %330 = vmatprep.subr.bf16.mxu0 0
    %331 = vmatpush1.bf16.xpose.msra.mxu0 0
    %332 = vmatprep.subr.bf16.mxu0 0
    %333 = vmatpush1.bf16.xpose.msra.mxu0 0
    %334 = vmatprep.subr.bf16.mxu0 0
    %335 = vmatpush1.bf16.xpose.msra.mxu0 0
    %336 = vmatprep.subr.bf16.mxu0 0
    %337 = vmatpush1.bf16.xpose.msra.mxu0 0
    %338 = vmatprep.subr.bf16.mxu0 0
    %339 = vmatpush1.bf16.xpose.msra.mxu0 0
    %340 = vmatprep.subr.bf16.mxu0 0
    %341 = vmatpush1.bf16.xpose.msra.mxu0 %v324
    %342 = vmatprep.subr.bf16.mxu0 0
    %343 = vmatpush2.bf16.xpose.msra.mxu0 0
    %344 = vmatprep.subr.bf16.mxu0 0
    %345 = vmatpush2.bf16.xpose.msra.mxu0 0
    %346 = vmatprep.subr.bf16.mxu0 0
    %347 = vmatpush2.bf16.xpose.msra.mxu0 0
    %348 = vmatprep.subr.bf16.mxu0 0
    %349 = vmatpush2.bf16.xpose.msra.mxu0 0
    %350 = vmatprep.subr.bf16.mxu0 0
    %351 = vmatpush2.bf16.xpose.msra.mxu0 0
    %352 = vmatprep.subr.bf16.mxu0 0
    %353 = vmatpush2.bf16.xpose.msra.mxu0 0
    %354 = vmatprep.subr.bf16.mxu0 0
    %355 = vmatpush2.bf16.xpose.msra.mxu0 0
    %356 = vmatprep.subr.bf16.mxu0 0
    %357 = vmatpush2.bf16.xpose.msra.mxu0 0
    %358 = vmatprep.mubr.bf16.mxu0 0
    %359 = vmatmul.mubr.bf16.gmra.mxu0 %v321
    %v360 = vpop.f32.mrf.mxu0
    %v361 = vadd.f32 %v81, %v360
    %v362 = vpop.f32.mrf.mxu0
    %v363 = vpop.f32.mrf.mxu0
    %v364 = vadd.f32 %v82, %v363
    %v365 = vpop.f32.mrf.mxu0
    %366 = vdwg.mxu0
    %v367 = vsel %vm244, %v361, -inf
    %368 = vmax.xlane.f32.xlu0 %v367
    %v369 = vpop.xlane.xlu0 %368
    %v370 = vsel %vm244, %v364, -inf
    %371 = vmax.xlane.f32.xlu0 %v370
    %v372 = vpop.xlane.xlu0 %371
    %v373 = vsub.f32 %v361, %v369
    %v374 = vsub.f32 %v364, %v372
    %v375 = vmul.f32 %v373, 1.442695
    %v376 = vpow.pop %v375
    %v377 = vmul.f32 %v374, 1.442695
    %v378 = vpow.pop %v377
    %v379 = vsel %vm244, %v376, 0.0
    %380 = vadd.xlane.f32.xlu0 %v379
    %v381 = vpop.xlane.xlu0 %380
    %v382 = vsel %vm244, %v378, 0.0
    %383 = vadd.xlane.f32.xlu0 %v382
    %v384 = vpop.xlane.xlu0 %383
    %v385 = vrcp.pop %v381
    %v386 = vrcp.pop %v384
    %v387 = vmul.f32 %v376, %v385
    %v388 = vmul.f32 %v378, %v386
    %v389 = vpack.c.bf16 %v388, %v387
    %390 = vrot.lane.b32.xlu0 %v188, 56
    %v391 = vpop.permute.xlu0 %390
    %v394 = vsel %vm244, %v389, 0
    %396 = vmatprep.subr.bf16.mxu0 0
    %397 = vmatpush1.bf16.msra.mxu0 0
    %398 = vmatprep.subr.bf16.mxu0 0
    %399 = vmatpush1.bf16.msra.mxu0 0
    %400 = vmatprep.subr.bf16.mxu0 0
    %401 = vmatpush1.bf16.msra.mxu0 0
    %402 = vmatprep.subr.bf16.mxu0 0
    %403 = vmatpush1.bf16.msra.mxu0 0
    %404 = vmatprep.subr.bf16.mxu0 0
    %405 = vmatpush1.bf16.msra.mxu0 0
    %406 = vmatprep.subr.bf16.mxu0 0
    %407 = vmatpush1.bf16.msra.mxu0 0
    %408 = vmatprep.subr.bf16.mxu0 0
    %409 = vmatpush1.bf16.msra.mxu0 0
    %410 = vmatprep.subr.bf16.mxu0 0
    %411 = vmatpush1.bf16.msra.mxu0 %v391
    %412 = vmatprep.subr.bf16.mxu0 0
    %413 = vmatpush2.bf16.msra.mxu0 0
    %414 = vmatprep.subr.bf16.mxu0 0
    %415 = vmatpush2.bf16.msra.mxu0 0
    %416 = vmatprep.subr.bf16.mxu0 0
    %417 = vmatpush2.bf16.msra.mxu0 0
    %418 = vmatprep.subr.bf16.mxu0 0
    %419 = vmatpush2.bf16.msra.mxu0 0
    %420 = vmatprep.subr.bf16.mxu0 0
    %421 = vmatpush2.bf16.msra.mxu0 0
    %422 = vmatprep.subr.bf16.mxu0 0
    %423 = vmatpush2.bf16.msra.mxu0 0
    %424 = vmatprep.subr.bf16.mxu0 0
    %425 = vmatpush2.bf16.msra.mxu0 0
    %426 = vmatprep.subr.bf16.mxu0 0
    %427 = vmatpush2.bf16.msra.mxu0 0
    %428 = vmatprep.mubr.bf16.mxu0 0
    %429 = vmatmul.mubr.bf16.gmra.mxu0 %v394
    %v430 = vpop.f32.mrf.mxu0
    %v431 = vadd.f32 0.0, %v430
    %v432 = vpop.f32.mrf.mxu0
    %v433 = vpop.f32.mrf.mxu0
    %v434 = vadd.f32 0.0, %v433
    %v435 = vpop.f32.mrf.mxu0
    %436 = vdwg.mxu0
    %v437 = vpack.c.bf16 %v434, %v431
    %v439 = vsel %vm196, %v437, 0
    %vm441 = vcmask 1043456
    %v443 = vsel %vm441, %v190, 0
    %445 = vmatprep.subr.bf16.mxu0 0
    %446 = vmatpush1.bf16.msra.mxu0 0
    %447 = vmatprep.subr.bf16.mxu0 0
    %448 = vmatpush1.bf16.msra.mxu0 0
    %449 = vmatprep.subr.bf16.mxu0 0
    %450 = vmatpush1.bf16.msra.mxu0 0
    %451 = vmatprep.subr.bf16.mxu0 0
    %452 = vmatpush1.bf16.msra.mxu0 0
    %453 = vmatprep.subr.bf16.mxu0 0
    %454 = vmatpush1.bf16.msra.mxu0 0
    %455 = vmatprep.subr.bf16.mxu0 0
    %456 = vmatpush1.bf16.msra.mxu0 0
    %457 = vmatprep.subr.bf16.mxu0 0
    %458 = vmatpush1.bf16.msra.mxu0 0
    %459 = vmatprep.subr.bf16.mxu0 0
    %460 = vmatpush1.bf16.msra.mxu0 %v443
    %461 = vmatprep.subr.bf16.mxu0 0
    %462 = vmatpush2.bf16.msra.mxu0 0
    %463 = vmatprep.subr.bf16.mxu0 0
    %464 = vmatpush2.bf16.msra.mxu0 0
    %465 = vmatprep.subr.bf16.mxu0 0
    %466 = vmatpush2.bf16.msra.mxu0 0
    %467 = vmatprep.subr.bf16.mxu0 0
    %468 = vmatpush2.bf16.msra.mxu0 0
    %469 = vmatprep.subr.bf16.mxu0 0
    %470 = vmatpush2.bf16.msra.mxu0 0
    %471 = vmatprep.subr.bf16.mxu0 0
    %472 = vmatpush2.bf16.msra.mxu0 0
    %473 = vmatprep.subr.bf16.mxu0 0
    %474 = vmatpush2.bf16.msra.mxu0 0
    %475 = vmatprep.subr.bf16.mxu0 0
    %476 = vmatpush2.bf16.msra.mxu0 0
    %477 = vmatprep.mubr.bf16.mxu0 0
    %478 = vmatmul.mubr.bf16.gmra.mxu0 %v439
    %v479 = vpop.f32.mrf.mxu0
    %v480 = vadd.f32 0.0, %v479
    %v481 = vpop.f32.mrf.mxu0
    %v482 = vpop.f32.mrf.mxu0
    %v483 = vadd.f32 0.0, %v482
    %v484 = vpop.f32.mrf.mxu0
    %485 = vdwg.mxu0
    %v487 = vsel %vm196, %v315, 0
    %v490 = vsel %vm441, %v189, 0
    %492 = vmatprep.subr.bf16.mxu0 0
    %493 = vmatpush1.bf16.msra.mxu0 0
    %494 = vmatprep.subr.bf16.mxu0 0
    %495 = vmatpush1.bf16.msra.mxu0 0
    %496 = vmatprep.subr.bf16.mxu0 0
    %497 = vmatpush1.bf16.msra.mxu0 0
    %498 = vmatprep.subr.bf16.mxu0 0
    %499 = vmatpush1.bf16.msra.mxu0 0
    %500 = vmatprep.subr.bf16.mxu0 0
    %501 = vmatpush1.bf16.msra.mxu0 0
    %502 = vmatprep.subr.bf16.mxu0 0
    %503 = vmatpush1.bf16.msra.mxu0 0
    %504 = vmatprep.subr.bf16.mxu0 0
    %505 = vmatpush1.bf16.msra.mxu0 0
    %506 = vmatprep.subr.bf16.mxu0 0
    %507 = vmatpush1.bf16.msra.mxu0 %v490
    %508 = vmatprep.subr.bf16.mxu0 0
    %509 = vmatpush2.bf16.msra.mxu0 0
    %510 = vmatprep.subr.bf16.mxu0 0
    %511 = vmatpush2.bf16.msra.mxu0 0
    %512 = vmatprep.subr.bf16.mxu0 0
    %513 = vmatpush2.bf16.msra.mxu0 0
    %514 = vmatprep.subr.bf16.mxu0 0
    %515 = vmatpush2.bf16.msra.mxu0 0
    %516 = vmatprep.subr.bf16.mxu0 0
    %517 = vmatpush2.bf16.msra.mxu0 0
    %518 = vmatprep.subr.bf16.mxu0 0
    %519 = vmatpush2.bf16.msra.mxu0 0
    %520 = vmatprep.subr.bf16.mxu0 0
    %521 = vmatpush2.bf16.msra.mxu0 0
    %522 = vmatprep.subr.bf16.mxu0 0
    %523 = vmatpush2.bf16.msra.mxu0 0
    %524 = vmatprep.mubr.bf16.mxu0 0
    %525 = vmatmul.mubr.bf16.gmra.mxu0 %v487
    %v526 = vpop.f32.mrf.mxu0
    %v527 = vadd.f32 %v480, %v526
    %v528 = vpop.f32.mrf.mxu0
    %v529 = vpop.f32.mrf.mxu0
    %v530 = vadd.f32 %v483, %v529
    %v531 = vpop.f32.mrf.mxu0
    %532 = vdwg.mxu0
    %533 = vrot.lane.b32.xlu0 %v188, 112
    %v534 = vpop.permute.xlu0 %533
    %535 = vrot.lane.b32.xlu0 %v188, 80
    %v536 = vpop.permute.xlu0 %535
    %v538 = vsel %vm196, %v534, 0
    %v541 = vsel %vm196, %v536, 0
    %543 = vmatprep.subr.bf16.mxu0 0
    %544 = vmatpush1.bf16.xpose.msra.mxu0 0
    %545 = vmatprep.subr.bf16.mxu0 0
    %546 = vmatpush1.bf16.xpose.msra.mxu0 0
    %547 = vmatprep.subr.bf16.mxu0 0
    %548 = vmatpush1.bf16.xpose.msra.mxu0 0
    %549 = vmatprep.subr.bf16.mxu0 0
    %550 = vmatpush1.bf16.xpose.msra.mxu0 0
    %551 = vmatprep.subr.bf16.mxu0 0
    %552 = vmatpush1.bf16.xpose.msra.mxu0 0
    %553 = vmatprep.subr.bf16.mxu0 0
    %554 = vmatpush1.bf16.xpose.msra.mxu0 0
    %555 = vmatprep.subr.bf16.mxu0 0
    %556 = vmatpush1.bf16.xpose.msra.mxu0 0
    %557 = vmatprep.subr.bf16.mxu0 0
    %558 = vmatpush1.bf16.xpose.msra.mxu0 %v541
    %559 = vmatprep.subr.bf16.mxu0 0
    %560 = vmatpush2.bf16.xpose.msra.mxu0 0
    %561 = vmatprep.subr.bf16.mxu0 0
    %562 = vmatpush2.bf16.xpose.msra.mxu0 0
    %563 = vmatprep.subr.bf16.mxu0 0
    %564 = vmatpush2.bf16.xpose.msra.mxu0 0
    %565 = vmatprep.subr.bf16.mxu0 0
    %566 = vmatpush2.bf16.xpose.msra.mxu0 0
    %567 = vmatprep.subr.bf16.mxu0 0
    %568 = vmatpush2.bf16.xpose.msra.mxu0 0
    %569 = vmatprep.subr.bf16.mxu0 0
    %570 = vmatpush2.bf16.xpose.msra.mxu0 0
    %571 = vmatprep.subr.bf16.mxu0 0
    %572 = vmatpush2.bf16.xpose.msra.mxu0 0
    %573 = vmatprep.subr.bf16.mxu0 0
    %574 = vmatpush2.bf16.xpose.msra.mxu0 0
    %575 = vmatprep.mubr.bf16.mxu0 0
    %576 = vmatmul.mubr.bf16.gmra.mxu0 %v538
    %v577 = vpop.f32.mrf.mxu0
    %v578 = vadd.f32 %v81, %v577
    %v579 = vpop.f32.mrf.mxu0
    %v580 = vpop.f32.mrf.mxu0
    %v581 = vadd.f32 %v82, %v580
    %v582 = vpop.f32.mrf.mxu0
    %583 = vdwg.mxu0
    %v584 = vsel %vm244, %v578, -inf
    %585 = vmax.xlane.f32.xlu0 %v584
    %v586 = vpop.xlane.xlu0 %585
    %v587 = vsel %vm244, %v581, -inf
    %588 = vmax.xlane.f32.xlu0 %v587
    %v589 = vpop.xlane.xlu0 %588
    %v590 = vsub.f32 %v578, %v586
    %v591 = vsub.f32 %v581, %v589
    %v592 = vmul.f32 %v590, 1.442695
    %v593 = vpow.pop %v592
    %v594 = vmul.f32 %v591, 1.442695
    %v595 = vpow.pop %v594
    %v596 = vsel %vm244, %v593, 0.0
    %597 = vadd.xlane.f32.xlu0 %v596
    %v598 = vpop.xlane.xlu0 %597
    %v599 = vsel %vm244, %v595, 0.0
    %600 = vadd.xlane.f32.xlu0 %v599
    %v601 = vpop.xlane.xlu0 %600
    %v602 = vrcp.pop %v598
    %v603 = vrcp.pop %v601
    %v604 = vmul.f32 %v593, %v602
    %v605 = vmul.f32 %v595, %v603
    %v606 = vpack.c.bf16 %v605, %v604
    %607 = vrot.lane.b32.xlu0 %v188, 48
    %v608 = vpop.permute.xlu0 %607
    %v611 = vsel %vm244, %v606, 0
    %613 = vmatprep.subr.bf16.mxu0 0
    %614 = vmatpush1.bf16.msra.mxu0 0
    %615 = vmatprep.subr.bf16.mxu0 0
    %616 = vmatpush1.bf16.msra.mxu0 0
    %617 = vmatprep.subr.bf16.mxu0 0
    %618 = vmatpush1.bf16.msra.mxu0 0
    %619 = vmatprep.subr.bf16.mxu0 0
    %620 = vmatpush1.bf16.msra.mxu0 0
    %621 = vmatprep.subr.bf16.mxu0 0
    %622 = vmatpush1.bf16.msra.mxu0 0
    %623 = vmatprep.subr.bf16.mxu0 0
    %624 = vmatpush1.bf16.msra.mxu0 0
    %625 = vmatprep.subr.bf16.mxu0 0
    %626 = vmatpush1.bf16.msra.mxu0 0
    %627 = vmatprep.subr.bf16.mxu0 0
    %628 = vmatpush1.bf16.msra.mxu0 %v608
    %629 = vmatprep.subr.bf16.mxu0 0
    %630 = vmatpush2.bf16.msra.mxu0 0
    %631 = vmatprep.subr.bf16.mxu0 0
    %632 = vmatpush2.bf16.msra.mxu0 0
    %633 = vmatprep.subr.bf16.mxu0 0
    %634 = vmatpush2.bf16.msra.mxu0 0
    %635 = vmatprep.subr.bf16.mxu0 0
    %636 = vmatpush2.bf16.msra.mxu0 0
    %637 = vmatprep.subr.bf16.mxu0 0
    %638 = vmatpush2.bf16.msra.mxu0 0
    %639 = vmatprep.subr.bf16.mxu0 0
    %640 = vmatpush2.bf16.msra.mxu0 0
    %641 = vmatprep.subr.bf16.mxu0 0
    %642 = vmatpush2.bf16.msra.mxu0 0
    %643 = vmatprep.subr.bf16.mxu0 0
    %644 = vmatpush2.bf16.msra.mxu0 0
    %645 = vmatprep.mubr.bf16.mxu0 0
    %646 = vmatmul.mubr.bf16.gmra.mxu0 %v611
    %v647 = vpop.f32.mrf.mxu0
    %v648 = vadd.f32 0.0, %v647
    %v649 = vpop.f32.mrf.mxu0
    %v650 = vpop.f32.mrf.mxu0
    %v651 = vadd.f32 0.0, %v650
    %v652 = vpop.f32.mrf.mxu0
    %653 = vdwg.mxu0
    %v654 = vpack.c.bf16 %v651, %v648
    %v656 = vsel %vm196, %v654, 0
    %v659 = vsel %vm441, %v191, 0
    %661 = vmatprep.subr.bf16.mxu0 0
    %662 = vmatpush1.bf16.msra.mxu0 0
    %663 = vmatprep.subr.bf16.mxu0 0
    %664 = vmatpush1.bf16.msra.mxu0 0
    %665 = vmatprep.subr.bf16.mxu0 0
    %666 = vmatpush1.bf16.msra.mxu0 0
    %667 = vmatprep.subr.bf16.mxu0 0
    %668 = vmatpush1.bf16.msra.mxu0 0
    %669 = vmatprep.subr.bf16.mxu0 0
    %670 = vmatpush1.bf16.msra.mxu0 0
    %671 = vmatprep.subr.bf16.mxu0 0
    %672 = vmatpush1.bf16.msra.mxu0 0
    %673 = vmatprep.subr.bf16.mxu0 0
    %674 = vmatpush1.bf16.msra.mxu0 0
    %675 = vmatprep.subr.bf16.mxu0 0
    %676 = vmatpush1.bf16.msra.mxu0 %v659
    %677 = vmatprep.subr.bf16.mxu0 0
    %678 = vmatpush2.bf16.msra.mxu0 0
    %679 = vmatprep.subr.bf16.mxu0 0
    %680 = vmatpush2.bf16.msra.mxu0 0
    %681 = vmatprep.subr.bf16.mxu0 0
    %682 = vmatpush2.bf16.msra.mxu0 0
    %683 = vmatprep.subr.bf16.mxu0 0
    %684 = vmatpush2.bf16.msra.mxu0 0
    %685 = vmatprep.subr.bf16.mxu0 0
    %686 = vmatpush2.bf16.msra.mxu0 0
    %687 = vmatprep.subr.bf16.mxu0 0
    %688 = vmatpush2.bf16.msra.mxu0 0
    %689 = vmatprep.subr.bf16.mxu0 0
    %690 = vmatpush2.bf16.msra.mxu0 0
    %691 = vmatprep.subr.bf16.mxu0 0
    %692 = vmatpush2.bf16.msra.mxu0 0
    %693 = vmatprep.mubr.bf16.mxu0 0
    %694 = vmatmul.mubr.bf16.gmra.mxu0 %v656
    %v695 = vpop.f32.mrf.mxu0
    %v696 = vadd.f32 0.0, %v695
    %v697 = vpop.f32.mrf.mxu0
    %v698 = vpop.f32.mrf.mxu0
    %v699 = vadd.f32 0.0, %v698
    %v700 = vpop.f32.mrf.mxu0
    %701 = vdwg.mxu0
    %v702 = vadd.f32 %v527, %v696
    %v703 = vadd.f32 %v530, %v699
    %704 = vrot.lane.b32.xlu0 %v188, 104
    %v705 = vpop.permute.xlu0 %704
    %706 = vrot.lane.b32.xlu0 %v188, 72
    %v707 = vpop.permute.xlu0 %706
    %v709 = vsel %vm196, %v705, 0
    %v712 = vsel %vm196, %v707, 0
    %714 = vmatprep.subr.bf16.mxu0 0
    %715 = vmatpush1.bf16.xpose.msra.mxu0 0
    %716 = vmatprep.subr.bf16.mxu0 0
    %717 = vmatpush1.bf16.xpose.msra.mxu0 0
    %718 = vmatprep.subr.bf16.mxu0 0
    %719 = vmatpush1.bf16.xpose.msra.mxu0 0
    %720 = vmatprep.subr.bf16.mxu0 0
    %721 = vmatpush1.bf16.xpose.msra.mxu0 0
    %722 = vmatprep.subr.bf16.mxu0 0
    %723 = vmatpush1.bf16.xpose.msra.mxu0 0
    %724 = vmatprep.subr.bf16.mxu0 0
    %725 = vmatpush1.bf16.xpose.msra.mxu0 0
    %726 = vmatprep.subr.bf16.mxu0 0
    %727 = vmatpush1.bf16.xpose.msra.mxu0 0
    %728 = vmatprep.subr.bf16.mxu0 0
    %729 = vmatpush1.bf16.xpose.msra.mxu0 %v712
    %730 = vmatprep.subr.bf16.mxu0 0
    %731 = vmatpush2.bf16.xpose.msra.mxu0 0
    %732 = vmatprep.subr.bf16.mxu0 0
    %733 = vmatpush2.bf16.xpose.msra.mxu0 0
    %734 = vmatprep.subr.bf16.mxu0 0
    %735 = vmatpush2.bf16.xpose.msra.mxu0 0
    %736 = vmatprep.subr.bf16.mxu0 0
    %737 = vmatpush2.bf16.xpose.msra.mxu0 0
    %738 = vmatprep.subr.bf16.mxu0 0
    %739 = vmatpush2.bf16.xpose.msra.mxu0 0
    %740 = vmatprep.subr.bf16.mxu0 0
    %741 = vmatpush2.bf16.xpose.msra.mxu0 0
    %742 = vmatprep.subr.bf16.mxu0 0
    %743 = vmatpush2.bf16.xpose.msra.mxu0 0
    %744 = vmatprep.subr.bf16.mxu0 0
    %745 = vmatpush2.bf16.xpose.msra.mxu0 0
    %746 = vmatprep.mubr.bf16.mxu0 0
    %747 = vmatmul.mubr.bf16.gmra.mxu0 %v709
    %v748 = vpop.f32.mrf.mxu0
    %v749 = vadd.f32 %v81, %v748
    %v750 = vpop.f32.mrf.mxu0
    %v751 = vpop.f32.mrf.mxu0
    %v752 = vadd.f32 %v82, %v751
    %v753 = vpop.f32.mrf.mxu0
    %754 = vdwg.mxu0
    %v755 = vsel %vm244, %v749, -inf
    %756 = vmax.xlane.f32.xlu0 %v755
    %v757 = vpop.xlane.xlu0 %756
    %v758 = vsel %vm244, %v752, -inf
    %759 = vmax.xlane.f32.xlu0 %v758
    %v760 = vpop.xlane.xlu0 %759
    %v761 = vsub.f32 %v749, %v757
    %v762 = vsub.f32 %v752, %v760
    %v763 = vmul.f32 %v761, 1.442695
    %v764 = vpow.pop %v763
    %v765 = vmul.f32 %v762, 1.442695
    %v766 = vpow.pop %v765
    %v767 = vsel %vm244, %v764, 0.0
    %768 = vadd.xlane.f32.xlu0 %v767
    %v769 = vpop.xlane.xlu0 %768
    %v770 = vsel %vm244, %v766, 0.0
    %771 = vadd.xlane.f32.xlu0 %v770
    %v772 = vpop.xlane.xlu0 %771
    %v773 = vrcp.pop %v769
    %v774 = vrcp.pop %v772
    %v775 = vmul.f32 %v764, %v773
    %v776 = vmul.f32 %v766, %v774
    %v777 = vpack.c.bf16 %v776, %v775
    %778 = vrot.lane.b32.xlu0 %v188, 40
    %v779 = vpop.permute.xlu0 %778
    %v782 = vsel %vm244, %v777, 0
    %784 = vmatprep.subr.bf16.mxu0 0
    %785 = vmatpush1.bf16.msra.mxu0 0
    %786 = vmatprep.subr.bf16.mxu0 0
    %787 = vmatpush1.bf16.msra.mxu0 0
    %788 = vmatprep.subr.bf16.mxu0 0
    %789 = vmatpush1.bf16.msra.mxu0 0
    %790 = vmatprep.subr.bf16.mxu0 0
    %791 = vmatpush1.bf16.msra.mxu0 0
    %792 = vmatprep.subr.bf16.mxu0 0
    %793 = vmatpush1.bf16.msra.mxu0 0
    %794 = vmatprep.subr.bf16.mxu0 0
    %795 = vmatpush1.bf16.msra.mxu0 0
    %796 = vmatprep.subr.bf16.mxu0 0
    %797 = vmatpush1.bf16.msra.mxu0 0
    %798 = vmatprep.subr.bf16.mxu0 0
    %799 = vmatpush1.bf16.msra.mxu0 %v779
    %800 = vmatprep.subr.bf16.mxu0 0
    %801 = vmatpush2.bf16.msra.mxu0 0
    %802 = vmatprep.subr.bf16.mxu0 0
    %803 = vmatpush2.bf16.msra.mxu0 0
    %804 = vmatprep.subr.bf16.mxu0 0
    %805 = vmatpush2.bf16.msra.mxu0 0
    %806 = vmatprep.subr.bf16.mxu0 0
    %807 = vmatpush2.bf16.msra.mxu0 0
    %808 = vmatprep.subr.bf16.mxu0 0
    %809 = vmatpush2.bf16.msra.mxu0 0
    %810 = vmatprep.subr.bf16.mxu0 0
    %811 = vmatpush2.bf16.msra.mxu0 0
    %812 = vmatprep.subr.bf16.mxu0 0
    %813 = vmatpush2.bf16.msra.mxu0 0
    %814 = vmatprep.subr.bf16.mxu0 0
    %815 = vmatpush2.bf16.msra.mxu0 0
    %816 = vmatprep.mubr.bf16.mxu0 0
    %817 = vmatmul.mubr.bf16.gmra.mxu0 %v782
    %v818 = vpop.f32.mrf.mxu0
    %v819 = vadd.f32 0.0, %v818
    %v820 = vpop.f32.mrf.mxu0
    %v821 = vpop.f32.mrf.mxu0
    %v822 = vadd.f32 0.0, %v821
    %v823 = vpop.f32.mrf.mxu0
    %824 = vdwg.mxu0
    %v825 = vpack.c.bf16 %v822, %v819
    %v827 = vsel %vm196, %v825, 0
    %v830 = vsel %vm441, %v192, 0
    %832 = vmatprep.subr.bf16.mxu0 0
    %833 = vmatpush1.bf16.msra.mxu0 0
    %834 = vmatprep.subr.bf16.mxu0 0
    %835 = vmatpush1.bf16.msra.mxu0 0
    %836 = vmatprep.subr.bf16.mxu0 0
    %837 = vmatpush1.bf16.msra.mxu0 0
    %838 = vmatprep.subr.bf16.mxu0 0
    %839 = vmatpush1.bf16.msra.mxu0 0
    %840 = vmatprep.subr.bf16.mxu0 0
    %841 = vmatpush1.bf16.msra.mxu0 0
    %842 = vmatprep.subr.bf16.mxu0 0
    %843 = vmatpush1.bf16.msra.mxu0 0
    %844 = vmatprep.subr.bf16.mxu0 0
    %845 = vmatpush1.bf16.msra.mxu0 0
    %846 = vmatprep.subr.bf16.mxu0 0
    %847 = vmatpush1.bf16.msra.mxu0 %v830
    %848 = vmatprep.subr.bf16.mxu0 0
    %849 = vmatpush2.bf16.msra.mxu0 0
    %850 = vmatprep.subr.bf16.mxu0 0
    %851 = vmatpush2.bf16.msra.mxu0 0
    %852 = vmatprep.subr.bf16.mxu0 0
    %853 = vmatpush2.bf16.msra.mxu0 0
    %854 = vmatprep.subr.bf16.mxu0 0
    %855 = vmatpush2.bf16.msra.mxu0 0
    %856 = vmatprep.subr.bf16.mxu0 0
    %857 = vmatpush2.bf16.msra.mxu0 0
    %858 = vmatprep.subr.bf16.mxu0 0
    %859 = vmatpush2.bf16.msra.mxu0 0
    %860 = vmatprep.subr.bf16.mxu0 0
    %861 = vmatpush2.bf16.msra.mxu0 0
    %862 = vmatprep.subr.bf16.mxu0 0
    %863 = vmatpush2.bf16.msra.mxu0 0
    %864 = vmatprep.mubr.bf16.mxu0 0
    %865 = vmatmul.mubr.bf16.gmra.mxu0 %v827
    %v866 = vpop.f32.mrf.mxu0
    %v867 = vadd.f32 0.0, %v866
    %v868 = vpop.f32.mrf.mxu0
    %v869 = vpop.f32.mrf.mxu0
    %v870 = vadd.f32 0.0, %v869
    %v871 = vpop.f32.mrf.mxu0
    %872 = vdwg.mxu0
    %v873 = vadd.f32 %v702, %v867
    %v874 = vadd.f32 %v703, %v870
    %v875 = vadd.f32 %v28, %v873
    %v876 = vadd.f32 %v29, %v874
    %v877 = vlaneseq
    %v878 = vshrl.u32 %v877, 7
    %v879 = vsub.s32 3, %v878
    %v880 = vrot.slane %v30, %v879
    %v881 = vadd.f32 %v875, %v880
    %v882 = vadd.f32 %v876, %v880
    %v883 = vsel %vm83, %v881, 0.0
    %884 = vadd.xlane.f32.xlu0 %v883
    %v885 = vpop.xlane.xlu0 %884
    %v886 = vsel %vm83, %v882, 0.0
    %887 = vadd.xlane.f32.xlu0 %v886
    %v888 = vpop.xlane.xlu0 %887
    %v889 = vmul.f32 %v885, %v90
    %v890 = vmul.f32 %v888, %v90
    %v891 = vsub.f32 %v881, %v889
    %v892 = vsub.f32 %v882, %v890
    %v893 = vmul.f32 %v891, %v891
    %v894 = vmul.f32 %v892, %v892
    %v895 = vsel %vm83, %v893, 0.0
    %896 = vadd.xlane.f32.xlu0 %v895
    %v897 = vpop.xlane.xlu0 %896
    %v898 = vsel %vm83, %v894, 0.0
    %899 = vadd.xlane.f32.xlu0 %v898
    %v900 = vpop.xlane.xlu0 %899
    %v901 = vmul.f32 %v897, %v90
    %v902 = vmul.f32 %v900, %v90
    %v903 = vadd.f32 %v901, 1e-05
    %v904 = vadd.f32 %v902, 1e-05
    %v905 = vrsqrt.pop %v903
    %v906 = vrsqrt.pop %v904
    %v907 = vmul.f32 %v891, %v905
    %v908 = vmul.f32 %v892, %v906
    %v909 = vlaneseq
    %v910 = vshrl.u32 %v909, 7
    %v911 = vsub.s32 4, %v910
    %v912 = vrot.slane %v30, %v911
    %v913 = vmul.f32 %v907, %v912
    %v914 = vmul.f32 %v908, %v912
    %v915 = vlaneseq
    %v916 = vshrl.u32 %v915, 7
    %v917 = vsub.s32 5, %v916
    %v918 = vrot.slane %v30, %v917
    %v919 = vadd.f32 %v913, %v918
    %v920 = vadd.f32 %v914, %v918
    %v921 = vpack.c.bf16 %v920, %v919
    %v922 = vld [vmem:[%s4] sm:$0xf]
    %v923 = vld [vmem:[%s4 + $0x4] sm:$0xf]
    %v924 = vld [vmem:[%s4 + $0x8] sm:$0xf]
    %v925 = vld [vmem:[%s4 + $0xc] sm:$0xf]
    %v926 = vlaneseq
    %v927 = vshrl.u32 %v926, 7
    %v928 = vsub.s32 6, %v927
    %v929 = vrot.slane %v30, %v928
    %v934 = vunpack.c.l.b16 %v922
    %v935 = vunpack.c.l.b16 %v923
    %v936 = vunpack.c.l.b16 %v924
    %v937 = vunpack.c.l.b16 %v925
    %v938 = vpack.c.b16 %v935, %v934
    %v939 = vpack.c.b16 %v937, %v936
    %v943 = vsel %vm83, %v921, 0
    %945 = vmatprep.subr.bf16.mxu0 0
    %946 = vmatpush1.bf16.msra.mxu0 0
    %947 = vmatprep.subr.bf16.mxu0 0
    %948 = vmatpush1.bf16.msra.mxu0 0
    %949 = vmatprep.subr.bf16.mxu0 0
    %950 = vmatpush1.bf16.msra.mxu0 0
    %951 = vmatprep.subr.bf16.mxu0 0
    %952 = vmatpush1.bf16.msra.mxu0 0
    %953 = vmatprep.subr.bf16.mxu0 0
    %954 = vmatpush1.bf16.msra.mxu0 0
    %955 = vmatprep.subr.bf16.mxu0 0
    %956 = vmatpush1.bf16.msra.mxu0 0
    %957 = vmatprep.subr.bf16.mxu0 0
    %958 = vmatpush1.bf16.msra.mxu0 %v939
    %959 = vmatprep.subr.bf16.mxu0 0
    %960 = vmatpush1.bf16.msra.mxu0 %v938
    %961 = vmatprep.subr.bf16.mxu0 0
    %962 = vmatpush2.bf16.msra.mxu0 0
    %963 = vmatprep.subr.bf16.mxu0 0
    %964 = vmatpush2.bf16.msra.mxu0 0
    %965 = vmatprep.subr.bf16.mxu0 0
    %966 = vmatpush2.bf16.msra.mxu0 0
    %967 = vmatprep.subr.bf16.mxu0 0
    %968 = vmatpush2.bf16.msra.mxu0 0
    %969 = vmatprep.subr.bf16.mxu0 0
    %970 = vmatpush2.bf16.msra.mxu0 0
    %971 = vmatprep.subr.bf16.mxu0 0
    %972 = vmatpush2.bf16.msra.mxu0 0
    %973 = vmatprep.subr.bf16.mxu0 0
    %974 = vmatpush2.bf16.msra.mxu0 0
    %975 = vmatprep.subr.bf16.mxu0 0
    %976 = vmatpush2.bf16.msra.mxu0 0
    %977 = vmatprep.mubr.bf16.mxu0 0
    %978 = vmatmul.mubr.bf16.gmra.mxu0 %v943
    %v979 = vpop.f32.mrf.mxu0
    %v980 = vadd.f32 %v929, %v979
    %v981 = vpop.f32.mrf.mxu0
    %v982 = vpop.f32.mrf.mxu0
    %v983 = vadd.f32 %v929, %v982
    %v984 = vpop.f32.mrf.mxu0
    %985 = vdwg.mxu0
    %v986 = vmul.f32 %v980, %v980
    %v987 = vmul.f32 %v983, %v983
    %v988 = vmul.f32 %v980, %v986
    %v989 = vmul.f32 %v983, %v987
    %v990 = vmul.f32 %v988, 0.044715
    %v991 = vmul.f32 %v989, 0.044715
    %v992 = vadd.f32 %v980, %v990
    %v993 = vadd.f32 %v983, %v991
    %v994 = vmul.f32 %v992, 0.7978846
    %v995 = vmul.f32 %v993, 0.7978846
    %v996 = vtanh.pop %v994
    %v997 = vtanh.pop %v995
    %v998 = vadd.f32 %v996, 1.0
    %v999 = vadd.f32 %v997, 1.0
    %v1000 = vmul.f32 %v998, 0.5
    %v1001 = vmul.f32 %v999, 0.5
    %v1002 = vmul.f32 %v980, %v1000
    %v1003 = vmul.f32 %v983, %v1001
    %v1004 = vpack.c.bf16 %v1003, %v1002
    %v1005 = vld [vmem:[%s5] sm:$0xf]
    %v1006 = vld [vmem:[%s5 + $0x4] sm:$0xf]
    %v1007 = vld [vmem:[%s5 + $0x8] sm:$0xf]
    %v1008 = vld [vmem:[%s5 + $0xc] sm:$0xf]
    %v1009 = vld [vmem:[%s5 + $0x10] sm:$0xf]
    %v1010 = vld [vmem:[%s5 + $0x14] sm:$0xf]
    %v1011 = vld [vmem:[%s5 + $0x18] sm:$0xf]
    %v1012 = vld [vmem:[%s5 + $0x1c] sm:$0xf]
    %v1013 = vld [vmem:[%s5 + $0x20] sm:$0xf]
    %v1014 = vld [vmem:[%s5 + $0x24] sm:$0xf]
    %v1015 = vld [vmem:[%s5 + $0x28] sm:$0xf]
    %v1016 = vld [vmem:[%s5 + $0x2c] sm:$0xf]
    %v1017 = vld [vmem:[%s5 + $0x30] sm:$0xf]
    %v1018 = vld [vmem:[%s5 + $0x34] sm:$0xf]
    %v1019 = vld [vmem:[%s5 + $0x38] sm:$0xf]
    %v1020 = vld [vmem:[%s5 + $0x3c] sm:$0xf]
    %v1021 = vlaneseq
    %v1022 = vshrl.u32 %v1021, 7
    %v1023 = vsub.s32 7, %v1022
    %v1024 = vrot.slane %v30, %v1023
    %v1041 = vunpack.c.l.b16 %v1005
    %v1042 = vunpack.c.l.b16 %v1006
    %v1043 = vunpack.c.l.b16 %v1007
    %v1044 = vunpack.c.l.b16 %v1008
    %v1045 = vunpack.c.l.b16 %v1009
    %v1046 = vunpack.c.l.b16 %v1010
    %v1047 = vunpack.c.l.b16 %v1011
    %v1048 = vunpack.c.l.b16 %v1012
    %v1049 = vunpack.c.l.b16 %v1013
    %v1050 = vunpack.c.l.b16 %v1014
    %v1051 = vunpack.c.l.b16 %v1015
    %v1052 = vunpack.c.l.b16 %v1016
    %v1053 = vunpack.c.l.b16 %v1017
    %v1054 = vunpack.c.l.b16 %v1018
    %v1055 = vunpack.c.l.b16 %v1019
    %v1056 = vunpack.c.l.b16 %v1020
    %v1057 = vpack.c.b16 %v1042, %v1041
    %v1058 = vpack.c.b16 %v1044, %v1043
    %v1059 = vpack.c.b16 %v1046, %v1045
    %v1060 = vpack.c.b16 %v1048, %v1047
    %v1061 = vpack.c.b16 %v1050, %v1049
    %v1062 = vpack.c.b16 %v1052, %v1051
    %v1063 = vpack.c.b16 %v1054, %v1053
    %v1064 = vpack.c.b16 %v1056, %v1055
    %1073 = vmatprep.subr.bf16.mxu0 0
    %1074 = vmatpush1.bf16.msra.mxu0 %v1064
    %1075 = vmatprep.subr.bf16.mxu0 0
    %1076 = vmatpush1.bf16.msra.mxu0 %v1063
    %1077 = vmatprep.subr.bf16.mxu0 0
    %1078 = vmatpush1.bf16.msra.mxu0 %v1062
    %1079 = vmatprep.subr.bf16.mxu0 0
    %1080 = vmatpush1.bf16.msra.mxu0 %v1061
    %1081 = vmatprep.subr.bf16.mxu0 0
    %1082 = vmatpush1.bf16.msra.mxu0 %v1060
    %1083 = vmatprep.subr.bf16.mxu0 0
    %1084 = vmatpush1.bf16.msra.mxu0 %v1059
    %1085 = vmatprep.subr.bf16.mxu0 0
    %1086 = vmatpush1.bf16.msra.mxu0 %v1058
    %1087 = vmatprep.subr.bf16.mxu0 0
    %1088 = vmatpush1.bf16.msra.mxu0 %v1057
    %1089 = vmatprep.subr.bf16.mxu0 0
    %1090 = vmatpush2.bf16.msra.mxu0 0
    %1091 = vmatprep.subr.bf16.mxu0 0
    %1092 = vmatpush2.bf16.msra.mxu0 0
    %1093 = vmatprep.subr.bf16.mxu0 0
    %1094 = vmatpush2.bf16.msra.mxu0 0
    %1095 = vmatprep.subr.bf16.mxu0 0
    %1096 = vmatpush2.bf16.msra.mxu0 0
    %1097 = vmatprep.subr.bf16.mxu0 0
    %1098 = vmatpush2.bf16.msra.mxu0 0
    %1099 = vmatprep.subr.bf16.mxu0 0
    %1100 = vmatpush2.bf16.msra.mxu0 0
    %1101 = vmatprep.subr.bf16.mxu0 0
    %1102 = vmatpush2.bf16.msra.mxu0 0
    %1103 = vmatprep.subr.bf16.mxu0 0
    %1104 = vmatpush2.bf16.msra.mxu0 0
    %1105 = vmatprep.mubr.bf16.mxu0 0
    %1106 = vmatmul.mubr.bf16.gmra.mxu0 %v1004
    %v1107 = vpop.f32.mrf.mxu0
    %v1108 = vadd.f32 %v1024, %v1107
    %v1109 = vpop.f32.mrf.mxu0
    %v1110 = vpop.f32.mrf.mxu0
    %v1111 = vadd.f32 %v1024, %v1110
    %v1112 = vpop.f32.mrf.mxu0
    %1113 = vdwg.mxu0
    %v1114 = vadd.f32 %v881, %v1108
    %v1115 = vadd.f32 %v882, %v1111
    %1116 = vst.msk [vmem:[#allocation2] sm:$0xff] %vm83, %v1114
    %1117 = vst.msk [vmem:[#allocation2 + $0x8] sm:$0xff] %vm83, %v1115
    // Predicated region
    $region30: #{residual_attention_block.1} parent=1 // pred_check
      _
    $region31: #{residual_attention_block.1} parent=1 // pred_check_branch
      %1119 = sbr.rel (0) target = $region33
    $region32: #{residual_attention_block.1} parent=1 // pred_region
      %s1121 = ssub.s32 256, 256
      %1122 = vsyncadd [#allocation3], %s1121
      %s1123 = sshll.u32 [#allocation2], 4
      %s1124 = int_to_ptr.vmem [resolvable:$true] %s1123
      %1129 = dma.vmem_to_hbm [thread:$0]  %s1124, 256, %s7, [#allocation3], 128, 128, 8
    $region33: #{residual_attention_block.1} parent=1 // pred_fallthru
      _
    // Predicated region
    $region34: #{residual_attention_block.1} parent=1 // pred_check
      _
    $region35: #{residual_attention_block.1} parent=1 // pred_check_branch
      %1131 = sbr.rel (0) target = $region37
    $region36: #{residual_attention_block.1} parent=1 // pred_region
      %1132 = dma.done [#allocation3], 256
    $region37: #{residual_attention_block.1} parent=1 // pred_fallthru
      _
    %1133 = vsyncpa [#allocation3], 1

</llo_original>
